<compile_context>
chip_gen: v7x
topology: tpu7x:2x2x1
jax: 0.10.0
libtpu: 0.0.40
codegen_flags: <defaults>
</compile_context>

<pallas_src>
import jax
import jax.numpy as jnp
from jax.experimental import pallas as pl
from jax.experimental.pallas import tpu as pltpu

D_MODEL = 32
N_HEAD = 4
DIM_FF = 64
HEAD_DIM = D_MODEL // N_HEAD
LN_EPS = 1e-5
MASK_NEG = -1e30


def _layer_norm(x, gamma, beta):
    mu = jnp.mean(x, axis=-1, keepdims=True)
    var = jnp.mean(jnp.square(x - mu), axis=-1, keepdims=True)
    return (x - mu) * jax.lax.rsqrt(var + LN_EPS) * gamma + beta


def encoder_layer_kernel(
    x_ref, mask_ref,
    ln1_g_ref, ln1_b_ref,
    wqkv_ref, bqkv_ref, wo_ref, bo_ref,
    ln2_g_ref, ln2_b_ref,
    w1_ref, b1_ref, w2_ref, b2_ref,
    out_ref,
):
    bt, S, D = x_ref.shape
    T = bt * S
    H, hd = N_HEAD, HEAD_DIM
    f32 = jnp.float32
    bf16 = jnp.bfloat16

    # Whole (bt, S, D) block flattened to one (bt*S, D) slab for all dense ops.
    x = x_ref[...].astype(f32).reshape(T, D)

    # Additive key-padding mask, kept at (bt, 1, S); head broadcast happens inside
    # the add below (no materialized H-fold copy of the mask).
    neg = jnp.where(mask_ref[...] > 0.0, 0.0, MASK_NEG).astype(f32)        # (bt,1,S)

    # ---------------- self-attention block (pre-norm) ----------------
    residual = x
    xn = _layer_norm(x, ln1_g_ref[...], ln1_b_ref[...])

    # Fused QKV: one (T,32)x(32,96) MXU pass; q-scaling already folded into wqkv/bqkv.
    qkv = jnp.dot(xn.astype(bf16), wqkv_ref[...],
                  preferred_element_type=f32) + bqkv_ref[...]              # (T,96) f32
    qkv = qkv.astype(bf16)

    def to_heads(slab):
        # (T, D) bf16 -> (H*bt, S, hd); per-head 8-lane views exist only here.
        heads = jnp.stack([slab[:, h * hd:(h + 1) * hd] for h in range(H)], axis=0)
        return heads.reshape(H * bt, S, hd)

    qh = to_heads(qkv[:, 0 * D:1 * D])
    kh = to_heads(qkv[:, 1 * D:2 * D])
    vh = to_heads(qkv[:, 2 * D:3 * D])

    # Batched scores for all heads+batches; deferred softmax normalization:
    # unnormalized exp -> PV matmul -> EUP reciprocal scale (rowsum stays f32).
    s = jnp.einsum("bqd,bkd->bqk", qh, kh, preferred_element_type=f32)     # (H*bt,S,S)
    s = (s.reshape(H, bt, S, S) + neg[None]).reshape(H * bt, S, S)
    m = jnp.max(s, axis=-1, keepdims=True)
    p = jnp.exp(s - m)                                                     # f32, unnormalized
    l = jnp.sum(p, axis=-1, keepdims=True)                                 # f32 rowsum
    ctx = jnp.einsum("bqk,bkd->bqd", p.astype(bf16), vh,
                     preferred_element_type=f32)                           # (H*bt,S,hd)
    ctx = ctx * pl.reciprocal(l, approx=True)

    # Repack heads into one (T, 32) slab (lane concat) and run ONE K=32 output proj.
    ctx_h = ctx.reshape(H, T, hd).astype(bf16)
    ctx_cat = jnp.concatenate([ctx_h[h] for h in range(H)], axis=-1)       # (T, D)
    attn = jnp.dot(ctx_cat, wo_ref[...], preferred_element_type=f32) + bo_ref[...]
    # TODO(synk): attention dropout omitted (eval-mode / inference semantics).
    x = residual + attn

    # ---------------- feed-forward block (pre-norm) ----------------
    residual = x
    xn = _layer_norm(x, ln2_g_ref[...], ln2_b_ref[...])
    h1 = jnp.dot(xn.astype(bf16), w1_ref[...], preferred_element_type=f32) + b1_ref[...]
    h1 = jnp.maximum(h1, 0.0)
    h2 = jnp.dot(h1.astype(bf16), w2_ref[...], preferred_element_type=f32) + b2_ref[...]
    # TODO(synk): FFN dropout omitted (eval-mode / inference semantics).
    x = residual + h2

    # TODO(synk): if bundle dumps show vst.msk saturation, switch to a lane-dense
    # (block_b, 1, S*D) output layout (host-side reshape back is free).
    out_ref[...] = x.reshape(bt, S, D).astype(out_ref.dtype)


def _prep_params(params):
    """Pre-arrange weights: fused [Wq*scale | Wk | Wv] (32,96) bf16 (+ fused bias),
    plain Wo/FFN weights in bf16, all biases / LN params f32."""
    bf16 = jnp.bfloat16
    f32 = jnp.float32
    scale = HEAD_DIM ** -0.5
    wqkv = jnp.concatenate([params["wq"] * scale, params["wk"], params["wv"]], axis=1)
    bqkv = jnp.concatenate([params["bq"] * scale, params["bk"], params["bv"]], axis=1)
    return [
        params["ln1_g"].astype(f32), params["ln1_b"].astype(f32),
        wqkv.astype(bf16), bqkv.astype(f32),
        params["wo"].astype(bf16), params["bo"].astype(f32),
        params["ln2_g"].astype(f32), params["ln2_b"].astype(f32),
        params["w1"].astype(bf16), params["b1"].astype(f32),
        params["w2"].astype(bf16), params["b2"].astype(f32),
    ]


def _tpu_config():
    """Per-generation (tensorcores_per_chip, vmem_limit_bytes, block_vmem_budget)."""
    MiB = 1024 * 1024
    try:
        kind = jax.devices()[0].device_kind.lower()
    except Exception:
        kind = ""
    if "v7" in kind:
        # 2 TensorCores / chip, 64 MiB physical VMEM per core.
        return 2, 48 * MiB, 28 * MiB
    if ("v6" in kind) or ("v5e" in kind) or ("v5 lite" in kind) or ("v5lite" in kind):
        # Single TensorCore, 128 MiB physical VMEM: let blocks grow.
        return 1, 100 * MiB, 72 * MiB
    # Unknown part: conservative settings that are safe everywhere.
    return 2, 32 * MiB, 20 * MiB


def _bytes_per_batch(S):
    """Rough peak VMEM bytes contributed by ONE batch element inside the kernel,
    including the O(S^2) attention score/prob buffers and double-buffered I/O."""
    f32b, bf16b = 4, 2
    io = 2 * 2 * S * D_MODEL * f32b                          # in + out, double-buffered
    act = S * (D_MODEL * 6 * f32b                            # x / residual / xn / attn ...
               + 3 * D_MODEL * (f32b + bf16b)                # qkv f32 + bf16
               + DIM_FF * (f32b + bf16b))                    # FFN hidden
    attn = N_HEAD * S * S * (f32b + bf16b)                   # scores f32 + probs bf16
    return int(1.5 * (io + act + attn)) + (1 << 16)          # layout-padding fudge


def _pick_block_b(B, S, tc_count, vmem_budget):
    cap = max(1, vmem_budget // _bytes_per_batch(S))
    # Multi-TensorCore parts: keep >= tc_count grid steps so the "parallel" axis can
    # shard across cores. Single-TC parts: one big block amortizes per-step overhead.
    target = B if tc_count <= 1 else max(1, B // tc_count)
    target = int(min(target, cap, B))
    for d in range(max(target, 1), 0, -1):                   # largest divisor of B <= target
        if B % d == 0:
            return d
    return 1


def encoder_layer(x, mask, params, block_b=None):
    B, S, D = x.shape
    assert D == D_MODEL
    tc_count, vmem_limit, vmem_budget = _tpu_config()
    if block_b is None:
        block_b = _pick_block_b(B, S, tc_count, vmem_budget)
    grid_b = B // block_b

    mask3 = mask.astype(jnp.float32).reshape(B, 1, S)
    weights = _prep_params(params)

    def full_spec(a):
        n = a.ndim
        return pl.BlockSpec(a.shape, lambda b, _n=n: (0,) * _n)

    in_specs = [
        pl.BlockSpec((block_b, S, D), lambda b: (b, 0, 0)),
        pl.BlockSpec((block_b, 1, S), lambda b: (b, 0, 0)),
    ] + [full_spec(w) for w in weights]

    # TODO(synk): for very long sequences (S >~ 1k) switch attention to a flash-style
    # KV-tiled inner pipeline so live memory is O(S * tile_k) instead of O(S^2).
    return pl.pallas_call(
        encoder_layer_kernel,
        out_shape=jax.ShapeDtypeStruct((B, S, D), x.dtype),
        grid=(grid_b,),
        in_specs=in_specs,
        out_specs=pl.BlockSpec((block_b, S, D), lambda b: (b, 0, 0)),
        compiler_params=pltpu.CompilerParams(
            dimension_semantics=("parallel",),
            vmem_limit_bytes=vmem_limit,
        ),
    )(x, mask3, *weights)


def reference(x, mask, p):
    """Pure-JAX f32 re-implementation of the PyTorch forward (eval mode)."""
    def ln(y, g, b):
        mu = y.mean(-1, keepdims=True)
        var = ((y - mu) ** 2).mean(-1, keepdims=True)
        return (y - mu) / jnp.sqrt(var + LN_EPS) * g + b

    B, S, D = x.shape
    residual = x
    xn = ln(x, p["ln1_g"], p["ln1_b"])
    q = (xn @ p["wq"] + p["bq"]) * HEAD_DIM ** -0.5
    k = xn @ p["wk"] + p["bk"]
    v = xn @ p["wv"] + p["bv"]
    q = q.reshape(B, S, N_HEAD, HEAD_DIM)
    k = k.reshape(B, S, N_HEAD, HEAD_DIM)
    v = v.reshape(B, S, N_HEAD, HEAD_DIM)
    scores = jnp.einsum("bqnh,bknh->bnqk", q, k)
    key_mask = (mask > 0)[:, None, None, :]
    scores = jnp.where(key_mask, scores, -jnp.inf)
    probs = jax.nn.softmax(scores, axis=-1)
    ctx = jnp.einsum("bnqk,bknh->bqnh", probs, v).reshape(B, S, D)
    x = residual + (ctx @ p["wo"] + p["bo"])
    residual = x
    xn = ln(x, p["ln2_g"], p["ln2_b"])
    h = jnp.maximum(xn @ p["w1"] + p["b1"], 0.0)
    return residual + (h @ p["w2"] + p["b2"])


def init_params(key):
    ks = jax.random.split(key, 12)
    return {
        "ln1_g": jnp.ones((1, D_MODEL), jnp.float32),
        "ln1_b": jnp.zeros((1, D_MODEL), jnp.float32),
        "wq": 0.1 * jax.random.normal(ks[0], (D_MODEL, D_MODEL), jnp.float32),
        "bq": 0.01 * jax.random.normal(ks[1], (1, D_MODEL), jnp.float32),
        "wk": 0.1 * jax.random.normal(ks[2], (D_MODEL, D_MODEL), jnp.float32),
        "bk": 0.01 * jax.random.normal(ks[3], (1, D_MODEL), jnp.float32),
        "wv": 0.1 * jax.random.normal(ks[4], (D_MODEL, D_MODEL), jnp.float32),
        "bv": 0.01 * jax.random.normal(ks[5], (1, D_MODEL), jnp.float32),
        "wo": 0.1 * jax.random.normal(ks[6], (D_MODEL, D_MODEL), jnp.float32),
        "bo": 0.01 * jax.random.normal(ks[7], (1, D_MODEL), jnp.float32),
        "ln2_g": jnp.ones((1, D_MODEL), jnp.float32),
        "ln2_b": jnp.zeros((1, D_MODEL), jnp.float32),
        "w1": 0.1 * jax.random.normal(ks[8], (D_MODEL, DIM_FF), jnp.float32),
        "b1": 0.01 * jax.random.normal(ks[9], (1, DIM_FF), jnp.float32),
        "w2": 0.1 * jax.random.normal(ks[10], (DIM_FF, D_MODEL), jnp.float32),
        "b2": 0.01 * jax.random.normal(ks[11], (1, D_MODEL), jnp.float32),
    }


if __name__ == "__main__":
    key = jax.random.PRNGKey(0)
    k_x, k_p = jax.random.split(key)

    B, S = 2, 8
    x = jax.random.normal(k_x, (B, S, D_MODEL), jnp.float32)
    # mask: batch x src_seq, 0 = padding (second sequence has 2 padded keys)
    mask = jnp.ones((B, S), jnp.int32).at[1, 6:].set(0)
    params = init_params(k_p)

    out = jax.block_until_ready(encoder_layer(x, mask, params))
    ref = reference(x, mask, params)

    assert out.shape == (B, S, D_MODEL)
    # Kernel uses bf16 matmul operands with f32 accumulation (and an approximate
    # EUP reciprocal for the softmax denominator) vs the pure-f32 reference.
    max_diff = float(jnp.max(jnp.abs(out - ref)))
    assert max_diff < 5e-2, f"max abs diff {max_diff}"
    print("KERNEL_OK")
</pallas_src>

<mosaic_0001>
module attributes {stable_mosaic.version = 11 : i64} {
  func.func @encoder_layer_kernel(%arg0: i32, %arg1: memref<1x8x32xf32, #tpu.memory_space<vmem>>, %arg2: memref<1x1x8xf32, #tpu.memory_space<vmem>>, %arg3: memref<1x32xf32, #tpu.memory_space<vmem>>, %arg4: memref<1x32xf32, #tpu.memory_space<vmem>>, %arg5: memref<32x96xbf16, #tpu.memory_space<vmem>>, %arg6: memref<1x96xf32, #tpu.memory_space<vmem>>, %arg7: memref<32x32xbf16, #tpu.memory_space<vmem>>, %arg8: memref<1x32xf32, #tpu.memory_space<vmem>>, %arg9: memref<1x32xf32, #tpu.memory_space<vmem>>, %arg10: memref<1x32xf32, #tpu.memory_space<vmem>>, %arg11: memref<32x64xbf16, #tpu.memory_space<vmem>>, %arg12: memref<1x64xf32, #tpu.memory_space<vmem>>, %arg13: memref<64x32xbf16, #tpu.memory_space<vmem>>, %arg14: memref<1x32xf32, #tpu.memory_space<vmem>>, %arg15: memref<1x8x32xf32, #tpu.memory_space<vmem>>) attributes {dimension_semantics = [#tpu.dimension_semantics<parallel>], iteration_bounds = array<i64: 2>, scalar_prefetch = 0 : i64, scratch_operands = 0 : i64, tpu.core_type = #tpu.core_type<tc>, window_params = [{transform_indices = @transform_0, window_bounds = array<i64: 1, 8, 32>}, {transform_indices = @transform_1, window_bounds = array<i64: 1, 1, 8>}, {pipeline_mode = #tpu.pipeline_mode<synchronous>, transform_indices = @transform_2, window_bounds = array<i64: 1, 32>}, {pipeline_mode = #tpu.pipeline_mode<synchronous>, transform_indices = @transform_3, window_bounds = array<i64: 1, 32>}, {pipeline_mode = #tpu.pipeline_mode<synchronous>, transform_indices = @transform_4, window_bounds = array<i64: 32, 96>}, {pipeline_mode = #tpu.pipeline_mode<synchronous>, transform_indices = @transform_5, window_bounds = array<i64: 1, 96>}, {pipeline_mode = #tpu.pipeline_mode<synchronous>, transform_indices = @transform_6, window_bounds = array<i64: 32, 32>}, {pipeline_mode = #tpu.pipeline_mode<synchronous>, transform_indices = @transform_7, window_bounds = array<i64: 1, 32>}, {pipeline_mode = #tpu.pipeline_mode<synchronous>, transform_indices = @transform_8, window_bounds = array<i64: 1, 32>}, {pipeline_mode = #tpu.pipeline_mode<synchronous>, transform_indices = @transform_9, window_bounds = array<i64: 1, 32>}, {pipeline_mode = #tpu.pipeline_mode<synchronous>, transform_indices = @transform_10, window_bounds = array<i64: 32, 64>}, {pipeline_mode = #tpu.pipeline_mode<synchronous>, transform_indices = @transform_11, window_bounds = array<i64: 1, 64>}, {pipeline_mode = #tpu.pipeline_mode<synchronous>, transform_indices = @transform_12, window_bounds = array<i64: 64, 32>}, {pipeline_mode = #tpu.pipeline_mode<synchronous>, transform_indices = @transform_13, window_bounds = array<i64: 1, 32>}, {transform_indices = @transform_14, window_bounds = array<i64: 1, 8, 32>}]} {
    %c0 = arith.constant 0 : index
    %c0_0 = arith.constant 0 : index
    %c0_1 = arith.constant 0 : index
    %0 = vector.load %arg1[%c0, %c0_0, %c0_1] : memref<1x8x32xf32, #tpu.memory_space<vmem>>, vector<1x8x32xf32>
    %1 = vector.shape_cast %0 : vector<1x8x32xf32> to vector<8x32xf32>
    %c0_2 = arith.constant 0 : index
    %c0_3 = arith.constant 0 : index
    %c0_4 = arith.constant 0 : index
    %2 = vector.load %arg2[%c0_2, %c0_3, %c0_4] : memref<1x1x8xf32, #tpu.memory_space<vmem>>, vector<1x1x8xf32>
    %cst = arith.constant 0.000000e+00 : f32
    %3 = vector.broadcast %cst : f32 to vector<1x1x8xf32>
    %4 = arith.cmpf ogt, %2, %3 : vector<1x1x8xf32>
    %cst_5 = arith.constant 0.000000e+00 : f32
    %cst_6 = arith.constant -1.000000e+30 : f32
    %5 = vector.broadcast %cst_5 : f32 to vector<1x1x8xf32>
    %6 = vector.broadcast %cst_6 : f32 to vector<1x1x8xf32>
    %7 = arith.select %4, %5, %6 : vector<1x1x8xi1>, vector<1x1x8xf32>
    %c0_7 = arith.constant 0 : index
    %c0_8 = arith.constant 0 : index
    %8 = vector.load %arg3[%c0_7, %c0_8] : memref<1x32xf32, #tpu.memory_space<vmem>>, vector<1x32xf32>
    %c0_9 = arith.constant 0 : index
    %c0_10 = arith.constant 0 : index
    %9 = vector.load %arg4[%c0_9, %c0_10] : memref<1x32xf32, #tpu.memory_space<vmem>>, vector<1x32xf32>
    %cst_11 = arith.constant dense<0.000000e+00> : vector<8xf32>
    %10 = vector.multi_reduction <add>, %1, %cst_11 [1] : vector<8x32xf32> to vector<8xf32>
    %11 = vector.shape_cast %10 : vector<8xf32> to vector<8x1xf32>
    %cst_12 = arith.constant 3.200000e+01 : f32
    %12 = vector.broadcast %cst_12 : f32 to vector<8x1xf32>
    %13 = arith.divf %11, %12 : vector<8x1xf32>
    %14 = vector.broadcast %13 : vector<8x1xf32> to vector<8x32xf32>
    %15 = arith.subf %1, %14 : vector<8x32xf32>
    %16 = arith.mulf %15, %15 : vector<8x32xf32>
    %cst_13 = arith.constant dense<0.000000e+00> : vector<8xf32>
    %17 = vector.multi_reduction <add>, %16, %cst_13 [1] : vector<8x32xf32> to vector<8xf32>
    %18 = vector.shape_cast %17 : vector<8xf32> to vector<8x1xf32>
    %cst_14 = arith.constant 3.200000e+01 : f32
    %19 = vector.broadcast %cst_14 : f32 to vector<8x1xf32>
    %20 = arith.divf %18, %19 : vector<8x1xf32>
    %21 = vector.broadcast %13 : vector<8x1xf32> to vector<8x32xf32>
    %22 = arith.subf %1, %21 : vector<8x32xf32>
    %cst_15 = arith.constant 9.99999974E-6 : f32
    %23 = vector.broadcast %cst_15 : f32 to vector<8x1xf32>
    %24 = arith.addf %20, %23 : vector<8x1xf32>
    %25 = math.rsqrt %24 : vector<8x1xf32>
    %26 = vector.broadcast %25 : vector<8x1xf32> to vector<8x32xf32>
    %27 = arith.mulf %22, %26 : vector<8x32xf32>
    %28 = vector.broadcast %8 : vector<1x32xf32> to vector<8x32xf32>
    %29 = arith.mulf %27, %28 : vector<8x32xf32>
    %30 = vector.broadcast %9 : vector<1x32xf32> to vector<8x32xf32>
    %31 = arith.addf %29, %30 : vector<8x32xf32>
    %32 = arith.truncf %31 : vector<8x32xf32> to vector<8x32xbf16>
    %c0_16 = arith.constant 0 : index
    %c0_17 = arith.constant 0 : index
    %33 = vector.load %arg5[%c0_16, %c0_17] : memref<32x96xbf16, #tpu.memory_space<vmem>>, vector<32x96xbf16>
    %cst_18 = arith.constant dense<0.000000e+00> : vector<8x96xf32>
    %34 = tpu.matmul %32, %33, %cst_18 {dimension_numbers = #tpu.dot_dimension_numbers<[1], [0], [0], [1], [0, 0, 1, 1], [], []>} : vector<8x32xbf16>, vector<32x96xbf16>, vector<8x96xf32> -> vector<8x96xf32>
    %c0_19 = arith.constant 0 : index
    %c0_20 = arith.constant 0 : index
    %35 = vector.load %arg6[%c0_19, %c0_20] : memref<1x96xf32, #tpu.memory_space<vmem>>, vector<1x96xf32>
    %36 = vector.broadcast %35 : vector<1x96xf32> to vector<8x96xf32>
    %37 = arith.addf %34, %36 : vector<8x96xf32>
    %38 = arith.truncf %37 : vector<8x96xf32> to vector<8x96xbf16>
    %39 = vector.extract_strided_slice %38 {offsets = [0, 0], sizes = [8, 32], strides = [1, 1]} : vector<8x96xbf16> to vector<8x32xbf16>
    %40 = vector.extract_strided_slice %39 {offsets = [0, 0], sizes = [8, 8], strides = [1, 1]} : vector<8x32xbf16> to vector<8x8xbf16>
    %41 = vector.extract_strided_slice %39 {offsets = [0, 8], sizes = [8, 8], strides = [1, 1]} : vector<8x32xbf16> to vector<8x8xbf16>
    %42 = vector.extract_strided_slice %39 {offsets = [0, 16], sizes = [8, 8], strides = [1, 1]} : vector<8x32xbf16> to vector<8x8xbf16>
    %43 = vector.extract_strided_slice %39 {offsets = [0, 24], sizes = [8, 8], strides = [1, 1]} : vector<8x32xbf16> to vector<8x8xbf16>
    %44 = vector.shape_cast %40 : vector<8x8xbf16> to vector<1x8x8xbf16>
    %45 = vector.shape_cast %41 : vector<8x8xbf16> to vector<1x8x8xbf16>
    %46 = vector.shape_cast %42 : vector<8x8xbf16> to vector<1x8x8xbf16>
    %47 = vector.shape_cast %43 : vector<8x8xbf16> to vector<1x8x8xbf16>
    %48 = tpu.concatenate %44, %45, %46, %47 in 0 : vector<1x8x8xbf16>, vector<1x8x8xbf16>, vector<1x8x8xbf16>, vector<1x8x8xbf16> -> vector<4x8x8xbf16>
    %49 = vector.extract_strided_slice %38 {offsets = [0, 32], sizes = [8, 32], strides = [1, 1]} : vector<8x96xbf16> to vector<8x32xbf16>
    %50 = vector.extract_strided_slice %49 {offsets = [0, 0], sizes = [8, 8], strides = [1, 1]} : vector<8x32xbf16> to vector<8x8xbf16>
    %51 = vector.extract_strided_slice %49 {offsets = [0, 8], sizes = [8, 8], strides = [1, 1]} : vector<8x32xbf16> to vector<8x8xbf16>
    %52 = vector.extract_strided_slice %49 {offsets = [0, 16], sizes = [8, 8], strides = [1, 1]} : vector<8x32xbf16> to vector<8x8xbf16>
    %53 = vector.extract_strided_slice %49 {offsets = [0, 24], sizes = [8, 8], strides = [1, 1]} : vector<8x32xbf16> to vector<8x8xbf16>
    %54 = vector.shape_cast %50 : vector<8x8xbf16> to vector<1x8x8xbf16>
    %55 = vector.shape_cast %51 : vector<8x8xbf16> to vector<1x8x8xbf16>
    %56 = vector.shape_cast %52 : vector<8x8xbf16> to vector<1x8x8xbf16>
    %57 = vector.shape_cast %53 : vector<8x8xbf16> to vector<1x8x8xbf16>
    %58 = tpu.concatenate %54, %55, %56, %57 in 0 : vector<1x8x8xbf16>, vector<1x8x8xbf16>, vector<1x8x8xbf16>, vector<1x8x8xbf16> -> vector<4x8x8xbf16>
    %59 = vector.extract_strided_slice %38 {offsets = [0, 64], sizes = [8, 32], strides = [1, 1]} : vector<8x96xbf16> to vector<8x32xbf16>
    %60 = vector.extract_strided_slice %59 {offsets = [0, 0], sizes = [8, 8], strides = [1, 1]} : vector<8x32xbf16> to vector<8x8xbf16>
    %61 = vector.extract_strided_slice %59 {offsets = [0, 8], sizes = [8, 8], strides = [1, 1]} : vector<8x32xbf16> to vector<8x8xbf16>
    %62 = vector.extract_strided_slice %59 {offsets = [0, 16], sizes = [8, 8], strides = [1, 1]} : vector<8x32xbf16> to vector<8x8xbf16>
    %63 = vector.extract_strided_slice %59 {offsets = [0, 24], sizes = [8, 8], strides = [1, 1]} : vector<8x32xbf16> to vector<8x8xbf16>
    %64 = vector.shape_cast %60 : vector<8x8xbf16> to vector<1x8x8xbf16>
    %65 = vector.shape_cast %61 : vector<8x8xbf16> to vector<1x8x8xbf16>
    %66 = vector.shape_cast %62 : vector<8x8xbf16> to vector<1x8x8xbf16>
    %67 = vector.shape_cast %63 : vector<8x8xbf16> to vector<1x8x8xbf16>
    %68 = tpu.concatenate %64, %65, %66, %67 in 0 : vector<1x8x8xbf16>, vector<1x8x8xbf16>, vector<1x8x8xbf16>, vector<1x8x8xbf16> -> vector<4x8x8xbf16>
    "tpu.trace_start"() <{level = 10 : i32, message = "bqd,bkd->bqk"}> : () -> ()
    %cst_21 = arith.constant dense<0.000000e+00> : vector<4x8x8xf32>
    %69 = tpu.matmul %48, %58, %cst_21 {dimension_numbers = #tpu.dot_dimension_numbers<[2], [2], [1], [1], [0, 0, 0, 1, 1, 1], [0], [0]>} : vector<4x8x8xbf16>, vector<4x8x8xbf16>, vector<4x8x8xf32> -> vector<4x8x8xf32>
    "tpu.trace_stop"() : () -> ()
    %70 = vector.shape_cast %69 : vector<4x8x8xf32> to vector<4x1x8x8xf32>
    %71 = vector.shape_cast %7 : vector<1x1x8xf32> to vector<1x1x1x8xf32>
    %72 = vector.broadcast %71 : vector<1x1x1x8xf32> to vector<4x1x8x8xf32>
    %73 = arith.addf %70, %72 : vector<4x1x8x8xf32>
    %74 = vector.shape_cast %73 : vector<4x1x8x8xf32> to vector<4x8x8xf32>
    %cst_22 = arith.constant dense<0xFF800000> : vector<4x8xf32>
    %75 = vector.multi_reduction <maximumf>, %74, %cst_22 [2] : vector<4x8x8xf32> to vector<4x8xf32>
    %76 = vector.shape_cast %75 : vector<4x8xf32> to vector<4x8x1xf32>
    %77 = vector.broadcast %76 : vector<4x8x1xf32> to vector<4x8x8xf32>
    %78 = arith.subf %74, %77 : vector<4x8x8xf32>
    %79 = math.exp %78 : vector<4x8x8xf32>
    %cst_23 = arith.constant dense<0.000000e+00> : vector<4x8xf32>
    %80 = vector.multi_reduction <add>, %79, %cst_23 [2] : vector<4x8x8xf32> to vector<4x8xf32>
    %81 = vector.shape_cast %80 : vector<4x8xf32> to vector<4x8x1xf32>
    %82 = arith.truncf %79 : vector<4x8x8xf32> to vector<4x8x8xbf16>
    "tpu.trace_start"() <{level = 10 : i32, message = "bqk,bkd->bqd"}> : () -> ()
    %cst_24 = arith.constant dense<0.000000e+00> : vector<4x8x8xf32>
    %83 = tpu.matmul %82, %68, %cst_24 {dimension_numbers = #tpu.dot_dimension_numbers<[2], [1], [1], [2], [0, 0, 0, 1, 1, 2], [0], [0]>} : vector<4x8x8xbf16>, vector<4x8x8xbf16>, vector<4x8x8xf32> -> vector<4x8x8xf32>
    "tpu.trace_stop"() : () -> ()
    %84 = tpu.reciprocal %81 {approx = true} : vector<4x8x1xf32> -> vector<4x8x1xf32>
    %85 = vector.broadcast %84 : vector<4x8x1xf32> to vector<4x8x8xf32>
    %86 = arith.mulf %83, %85 : vector<4x8x8xf32>
    %87 = arith.truncf %86 : vector<4x8x8xf32> to vector<4x8x8xbf16>
    %88 = vector.extract_strided_slice %87 {offsets = [0, 0, 0], sizes = [1, 8, 8], strides = [1, 1, 1]} : vector<4x8x8xbf16> to vector<1x8x8xbf16>
    %89 = vector.shape_cast %88 : vector<1x8x8xbf16> to vector<8x8xbf16>
    %90 = vector.extract_strided_slice %87 {offsets = [1, 0, 0], sizes = [1, 8, 8], strides = [1, 1, 1]} : vector<4x8x8xbf16> to vector<1x8x8xbf16>
    %91 = vector.shape_cast %90 : vector<1x8x8xbf16> to vector<8x8xbf16>
    %92 = vector.extract_strided_slice %87 {offsets = [2, 0, 0], sizes = [1, 8, 8], strides = [1, 1, 1]} : vector<4x8x8xbf16> to vector<1x8x8xbf16>
    %93 = vector.shape_cast %92 : vector<1x8x8xbf16> to vector<8x8xbf16>
    %94 = vector.extract_strided_slice %87 {offsets = [3, 0, 0], sizes = [1, 8, 8], strides = [1, 1, 1]} : vector<4x8x8xbf16> to vector<1x8x8xbf16>
    %95 = vector.shape_cast %94 : vector<1x8x8xbf16> to vector<8x8xbf16>
    %96 = tpu.concatenate %89, %91, %93, %95 in 1 : vector<8x8xbf16>, vector<8x8xbf16>, vector<8x8xbf16>, vector<8x8xbf16> -> vector<8x32xbf16>
    %c0_25 = arith.constant 0 : index
    %c0_26 = arith.constant 0 : index
    %97 = vector.load %arg7[%c0_25, %c0_26] : memref<32x32xbf16, #tpu.memory_space<vmem>>, vector<32x32xbf16>
    %cst_27 = arith.constant dense<0.000000e+00> : vector<8x32xf32>
    %98 = tpu.matmul %96, %97, %cst_27 {dimension_numbers = #tpu.dot_dimension_numbers<[1], [0], [0], [1], [0, 0, 1, 1], [], []>} : vector<8x32xbf16>, vector<32x32xbf16>, vector<8x32xf32> -> vector<8x32xf32>
    %c0_28 = arith.constant 0 : index
    %c0_29 = arith.constant 0 : index
    %99 = vector.load %arg8[%c0_28, %c0_29] : memref<1x32xf32, #tpu.memory_space<vmem>>, vector<1x32xf32>
    %100 = vector.broadcast %99 : vector<1x32xf32> to vector<8x32xf32>
    %101 = arith.addf %98, %100 : vector<8x32xf32>
    %102 = arith.addf %1, %101 : vector<8x32xf32>
    %c0_30 = arith.constant 0 : index
    %c0_31 = arith.constant 0 : index
    %103 = vector.load %arg9[%c0_30, %c0_31] : memref<1x32xf32, #tpu.memory_space<vmem>>, vector<1x32xf32>
    %c0_32 = arith.constant 0 : index
    %c0_33 = arith.constant 0 : index
    %104 = vector.load %arg10[%c0_32, %c0_33] : memref<1x32xf32, #tpu.memory_space<vmem>>, vector<1x32xf32>
    %cst_34 = arith.constant dense<0.000000e+00> : vector<8xf32>
    %105 = vector.multi_reduction <add>, %102, %cst_34 [1] : vector<8x32xf32> to vector<8xf32>
    %106 = vector.shape_cast %105 : vector<8xf32> to vector<8x1xf32>
    %cst_35 = arith.constant 3.200000e+01 : f32
    %107 = vector.broadcast %cst_35 : f32 to vector<8x1xf32>
    %108 = arith.divf %106, %107 : vector<8x1xf32>
    %109 = vector.broadcast %108 : vector<8x1xf32> to vector<8x32xf32>
    %110 = arith.subf %102, %109 : vector<8x32xf32>
    %111 = arith.mulf %110, %110 : vector<8x32xf32>
    %cst_36 = arith.constant dense<0.000000e+00> : vector<8xf32>
    %112 = vector.multi_reduction <add>, %111, %cst_36 [1] : vector<8x32xf32> to vector<8xf32>
    %113 = vector.shape_cast %112 : vector<8xf32> to vector<8x1xf32>
    %cst_37 = arith.constant 3.200000e+01 : f32
    %114 = vector.broadcast %cst_37 : f32 to vector<8x1xf32>
    %115 = arith.divf %113, %114 : vector<8x1xf32>
    %116 = vector.broadcast %108 : vector<8x1xf32> to vector<8x32xf32>
    %117 = arith.subf %102, %116 : vector<8x32xf32>
    %cst_38 = arith.constant 9.99999974E-6 : f32
    %118 = vector.broadcast %cst_38 : f32 to vector<8x1xf32>
    %119 = arith.addf %115, %118 : vector<8x1xf32>
    %120 = math.rsqrt %119 : vector<8x1xf32>
    %121 = vector.broadcast %120 : vector<8x1xf32> to vector<8x32xf32>
    %122 = arith.mulf %117, %121 : vector<8x32xf32>
    %123 = vector.broadcast %103 : vector<1x32xf32> to vector<8x32xf32>
    %124 = arith.mulf %122, %123 : vector<8x32xf32>
    %125 = vector.broadcast %104 : vector<1x32xf32> to vector<8x32xf32>
    %126 = arith.addf %124, %125 : vector<8x32xf32>
    %127 = arith.truncf %126 : vector<8x32xf32> to vector<8x32xbf16>
    %c0_39 = arith.constant 0 : index
    %c0_40 = arith.constant 0 : index
    %128 = vector.load %arg11[%c0_39, %c0_40] : memref<32x64xbf16, #tpu.memory_space<vmem>>, vector<32x64xbf16>
    %cst_41 = arith.constant dense<0.000000e+00> : vector<8x64xf32>
    %129 = tpu.matmul %127, %128, %cst_41 {dimension_numbers = #tpu.dot_dimension_numbers<[1], [0], [0], [1], [0, 0, 1, 1], [], []>} : vector<8x32xbf16>, vector<32x64xbf16>, vector<8x64xf32> -> vector<8x64xf32>
    %c0_42 = arith.constant 0 : index
    %c0_43 = arith.constant 0 : index
    %130 = vector.load %arg12[%c0_42, %c0_43] : memref<1x64xf32, #tpu.memory_space<vmem>>, vector<1x64xf32>
    %131 = vector.broadcast %130 : vector<1x64xf32> to vector<8x64xf32>
    %132 = arith.addf %129, %131 : vector<8x64xf32>
    %cst_44 = arith.constant 0.000000e+00 : f32
    %133 = vector.broadcast %cst_44 : f32 to vector<8x64xf32>
    %134 = arith.maximumf %132, %133 : vector<8x64xf32>
    %135 = arith.truncf %134 : vector<8x64xf32> to vector<8x64xbf16>
    %c0_45 = arith.constant 0 : index
    %c0_46 = arith.constant 0 : index
    %136 = vector.load %arg13[%c0_45, %c0_46] : memref<64x32xbf16, #tpu.memory_space<vmem>>, vector<64x32xbf16>
    %cst_47 = arith.constant dense<0.000000e+00> : vector<8x32xf32>
    %137 = tpu.matmul %135, %136, %cst_47 {dimension_numbers = #tpu.dot_dimension_numbers<[1], [0], [0], [1], [0, 0, 1, 1], [], []>} : vector<8x64xbf16>, vector<64x32xbf16>, vector<8x32xf32> -> vector<8x32xf32>
    %c0_48 = arith.constant 0 : index
    %c0_49 = arith.constant 0 : index
    %138 = vector.load %arg14[%c0_48, %c0_49] : memref<1x32xf32, #tpu.memory_space<vmem>>, vector<1x32xf32>
    %139 = vector.broadcast %138 : vector<1x32xf32> to vector<8x32xf32>
    %140 = arith.addf %137, %139 : vector<8x32xf32>
    %141 = arith.addf %102, %140 : vector<8x32xf32>
    %142 = vector.shape_cast %141 : vector<8x32xf32> to vector<1x8x32xf32>
    %c0_50 = arith.constant 0 : index
    %c0_51 = arith.constant 0 : index
    %c0_52 = arith.constant 0 : index
    %143 = vector.load %arg15[%c0_50, %c0_51, %c0_52] : memref<1x8x32xf32, #tpu.memory_space<vmem>>, vector<1x8x32xf32>
    tpu.vector_store %arg15[%c0_50, %c0_51, %c0_52], %142 {strides = array<i32>} : memref<1x8x32xf32, #tpu.memory_space<vmem>>, vector<1x8x32xf32>,
    return
  }
  func.func @transform_0(%arg0: i32) -> (i32, i32, i32) {
    %c0_i32 = arith.constant 0 : i32
    %c0_i32_0 = arith.constant 0 : i32
    %c0_i32_1 = arith.constant 0 : i32
    return %arg0, %c0_i32, %c0_i32_0 : i32, i32, i32
  }
  func.func @transform_1(%arg0: i32) -> (i32, i32, i32) {
    %c0_i32 = arith.constant 0 : i32
    %c0_i32_0 = arith.constant 0 : i32
    %c0_i32_1 = arith.constant 0 : i32
    return %arg0, %c0_i32, %c0_i32_0 : i32, i32, i32
  }
  func.func @transform_2(%arg0: i32) -> (i32, i32) {
    %c0_i32 = arith.constant 0 : i32
    %c0_i32_0 = arith.constant 0 : i32
    %c0_i32_1 = arith.constant 0 : i32
    return %c0_i32, %c0_i32_0 : i32, i32
  }
  func.func @transform_3(%arg0: i32) -> (i32, i32) {
    %c0_i32 = arith.constant 0 : i32
    %c0_i32_0 = arith.constant 0 : i32
    %c0_i32_1 = arith.constant 0 : i32
    return %c0_i32, %c0_i32_0 : i32, i32
  }
  func.func @transform_4(%arg0: i32) -> (i32, i32) {
    %c0_i32 = arith.constant 0 : i32
    %c0_i32_0 = arith.constant 0 : i32
    %c0_i32_1 = arith.constant 0 : i32
    return %c0_i32, %c0_i32_0 : i32, i32
  }
  func.func @transform_5(%arg0: i32) -> (i32, i32) {
    %c0_i32 = arith.constant 0 : i32
    %c0_i32_0 = arith.constant 0 : i32
    %c0_i32_1 = arith.constant 0 : i32
    return %c0_i32, %c0_i32_0 : i32, i32
  }
  func.func @transform_6(%arg0: i32) -> (i32, i32) {
    %c0_i32 = arith.constant 0 : i32
    %c0_i32_0 = arith.constant 0 : i32
    %c0_i32_1 = arith.constant 0 : i32
    return %c0_i32, %c0_i32_0 : i32, i32
  }
  func.func @transform_7(%arg0: i32) -> (i32, i32) {
    %c0_i32 = arith.constant 0 : i32
    %c0_i32_0 = arith.constant 0 : i32
    %c0_i32_1 = arith.constant 0 : i32
    return %c0_i32, %c0_i32_0 : i32, i32
  }
  func.func @transform_8(%arg0: i32) -> (i32, i32) {
    %c0_i32 = arith.constant 0 : i32
    %c0_i32_0 = arith.constant 0 : i32
    %c0_i32_1 = arith.constant 0 : i32
    return %c0_i32, %c0_i32_0 : i32, i32
  }
  func.func @transform_9(%arg0: i32) -> (i32, i32) {
    %c0_i32 = arith.constant 0 : i32
    %c0_i32_0 = arith.constant 0 : i32
    %c0_i32_1 = arith.constant 0 : i32
    return %c0_i32, %c0_i32_0 : i32, i32
  }
  func.func @transform_10(%arg0: i32) -> (i32, i32) {
    %c0_i32 = arith.constant 0 : i32
    %c0_i32_0 = arith.constant 0 : i32
    %c0_i32_1 = arith.constant 0 : i32
    return %c0_i32, %c0_i32_0 : i32, i32
  }
  func.func @transform_11(%arg0: i32) -> (i32, i32) {
    %c0_i32 = arith.constant 0 : i32
    %c0_i32_0 = arith.constant 0 : i32
    %c0_i32_1 = arith.constant 0 : i32
    return %c0_i32, %c0_i32_0 : i32, i32
  }
  func.func @transform_12(%arg0: i32) -> (i32, i32) {
    %c0_i32 = arith.constant 0 : i32
    %c0_i32_0 = arith.constant 0 : i32
    %c0_i32_1 = arith.constant 0 : i32
    return %c0_i32, %c0_i32_0 : i32, i32
  }
  func.func @transform_13(%arg0: i32) -> (i32, i32) {
    %c0_i32 = arith.constant 0 : i32
    %c0_i32_0 = arith.constant 0 : i32
    %c0_i32_1 = arith.constant 0 : i32
    return %c0_i32, %c0_i32_0 : i32, i32
  }
  func.func @transform_14(%arg0: i32) -> (i32, i32, i32) {
    %c0_i32 = arith.constant 0 : i32
    %c0_i32_0 = arith.constant 0 : i32
    %c0_i32_1 = arith.constant 0 : i32
    return %arg0, %c0_i32, %c0_i32_0 : i32, i32, i32
  }
}

</mosaic_0001>

<llo_original>
// kernel: tpu_custom_call.1
$region0: #{tpu_custom_call.1}
  #allocation0 [shape = 'u32[]', space=smem, size = 0x4, offset = 0x4, fixed_abs, tag = 'smem constant byte address 0x4 - core index']
  #allocation1 [shape = 'u32[144,128]{1,0:T(1,128)}', space=vmem, size = 0x12000, scoped, tag = 'internal scratch']
  %s0 = inlined_call_operand.vmem [shape: f32[2,8,32], index: 0, kind: input, shape index: {}]
  %s1 = inlined_call_operand.vmem [shape: f32[2,1,8], index: 1, kind: input, shape index: {}]
  %s2 = inlined_call_operand.hbm [shape: f32[1,32], index: 2, kind: input, shape index: {}]
  %s3 = inlined_call_operand.hbm [shape: f32[1,32], index: 3, kind: input, shape index: {}]
  %s4 = inlined_call_operand.vmem [shape: bf16[32,96], index: 4, kind: input, shape index: {}]
  %s5 = inlined_call_operand.hbm [shape: f32[1,96], index: 5, kind: input, shape index: {}]
  %s6 = inlined_call_operand.vmem [shape: bf16[32,32], index: 6, kind: input, shape index: {}]
  %s7 = inlined_call_operand.hbm [shape: f32[1,32], index: 7, kind: input, shape index: {}]
  %s8 = inlined_call_operand.hbm [shape: f32[1,32], index: 8, kind: input, shape index: {}]
  %s9 = inlined_call_operand.hbm [shape: f32[1,32], index: 9, kind: input, shape index: {}]
  %s10 = inlined_call_operand.vmem [shape: bf16[32,64], index: 10, kind: input, shape index: {}]
  %s11 = inlined_call_operand.vmem [shape: f32[1,64], index: 11, kind: input, shape index: {}]
  %s12 = inlined_call_operand.vmem [shape: bf16[64,32], index: 12, kind: input, shape index: {}]
  %s13 = inlined_call_operand.vmem [shape: f32[1,32], index: 13, kind: input, shape index: {}]
  %s14 = inlined_call_operand.hbm [shape: f32[2,8,32], index: 14, kind: output, shape index: {}]
  %s15 = sld [smem:[#allocation0]]
  $region113: #{tpu_custom_call.1} parent=0
    _
  %s17 = ssub.s32 1, %s15
  %s18 = scalar_select 0, %s17, %s15
  $region1: #{tpu_custom_call.1} parent=0
    #allocation2 [shape = 'u8[512]{0}', space=vmem, size = 0x400, scoped, tag = 'input window, operand 2, single buffered']
    #allocation3 [shape = 's32[2]{0}', space=sflag, size = 0x8, scoped, tag = 'scoped memory for tpu_custom_call.1']
    #allocation4 [shape = 's32[2]{0}', space=sflag, size = 0x8, scoped, tag = 'scoped memory for tpu_custom_call.1']
    #allocation5 [shape = 'u8[512]{0}', space=vmem, size = 0x400, scoped, tag = 'input window, operand 3, single buffered']
    #allocation6 [shape = 's32[1]{0}', space=sflag, size = 0x4, scoped, tag = 'scoped memory for tpu_custom_call.1']
    #allocation7 [shape = 'u8[512]{0}', space=vmem, size = 0x400, scoped, tag = 'input window, operand 5, single buffered']
    #allocation8 [shape = 'u8[512]{0}', space=vmem, size = 0x400, scoped, tag = 'input window, operand 7, single buffered']
    #allocation9 [shape = 's32[1]{0}', space=sflag, size = 0x4, scoped, tag = 'scoped memory for tpu_custom_call.1']
    #allocation10 [shape = 'u8[512]{0}', space=vmem, size = 0x400, scoped, tag = 'input window, operand 8, single buffered']
    #allocation11 [shape = 'u8[512]{0}', space=vmem, size = 0x400, scoped, tag = 'input window, operand 9, single buffered']
    #allocation12 [shape = 's32[1]{0}', space=sflag, size = 0x4, scoped, tag = 'scoped memory for tpu_custom_call.1']
    #allocation13 [shape = 'u8[8192]{0}', space=vmem, size = 0x2000, scoped, tag = 'output window, operand 0']
    %19 = vsyncpa [#allocation3], 0
    %20 = vsyncpa [#allocation6], 0
    %21 = vsyncpa [#allocation9], 0
    %22 = vsyncpa [#allocation12], 0
    %23 = vsyncpa [#allocation4], 0
    %s24 = scalar_lea.sflag [#allocation4], 1
    %25 = vsyncpa %s24, 0
    loop: start=0, step=1, limit=4
    $region2: #{tpu_custom_call.1} parent=1 // loop_pre_header
      _
    $region3: #{tpu_custom_call.1} parent=1 // loop_header
      %s27 = sphi 0, %s31
      %p28 = scmp.ge.s32.totalorder %s27, 4
      %s37 = sphi 0, %s39
      %s40 = sphi 0, %s37
      %s41 = sphi 0, %s40
      %s57 = sphi 0, %s41
      %s63 = sphi 0, %s65
      %s66 = sphi 0, %s63
      %s67 = sphi 0, %s66
      %s83 = sphi 0, %s67
      %s87 = sphi 0, %s87
      %s89 = sphi 0, %s87
      %s90 = sphi 0, %s89
      %s104 = sphi 0, %s90
      %s108 = sphi 0, %s108
      %s110 = sphi 0, %s108
      %s111 = sphi 0, %s110
      %s125 = sphi 0, %s111
      %s129 = sphi 0, %s129
      %s131 = sphi 0, %s129
      %s132 = sphi 0, %s131
      %s146 = sphi 0, %s132
      %s150 = sphi 0, %s150
      %s152 = sphi 0, %s150
      %s153 = sphi 0, %s152
      %s167 = sphi 0, %s153
      %s171 = sphi 0, %s171
      %s173 = sphi 0, %s171
      %s174 = sphi 0, %s173
      %s188 = sphi 0, %s174
      %s192 = sphi 0, %s192
      %s194 = sphi 0, %s192
      %s195 = sphi 0, %s194
      %s209 = sphi 0, %s195
      %s213 = sphi 0, %s213
      %s215 = sphi 0, %s213
      %s216 = sphi 0, %s215
      %s230 = sphi 0, %s216
      %s234 = sphi 0, %s234
      %s236 = sphi 0, %s234
      %s237 = sphi 0, %s236
      %s251 = sphi 0, %s237
      %s255 = sphi 0, %s255
      %s257 = sphi 0, %s255
      %s258 = sphi 0, %s257
      %s272 = sphi 0, %s258
      %s276 = sphi 0, %s276
      %s278 = sphi 0, %s276
      %s279 = sphi 0, %s278
      %s293 = sphi 0, %s279
      %s297 = sphi 0, %s297
      %s299 = sphi 0, %s297
      %s300 = sphi 0, %s299
      %s314 = sphi 0, %s300
      %s318 = sphi 0, %s318
      %s320 = sphi 0, %s318
      %s321 = sphi 0, %s320
      %s335 = sphi 0, %s321
      %s341 = sphi 0, %s343
      %s344 = sphi 0, %s341
      %s345 = sphi 0, %s344
      %s361 = sphi 0, %s345
    $region4: #{tpu_custom_call.1} parent=1 // loop_header_branch
      %30 = sbr.rel (%p28) target = $region8
    $region5: #{tpu_custom_call.1} parent=1 // loop_body
      %s32 = ssub.s32 %s27, 1
      %s33 = ssub.s32 %s27, 2
      %s34 = sadd.s32 %s27, 1
      %s35 = ssub.s32 %s27, %s34
      %p36 = scmp.eq.s32.totalorder %s35, 0
      %s38 = sadd.s32 %s37, 1
      %s39 = scalar_select %p36, %s37, %s38
      %p42 = pneg %p36
      %p43 = scmp.eq.s32.totalorder %s27, 1
      %p44 = por %p42, %p43
      %p45 = scmp.ne.s32.totalorder %s37, %s40
      %p46 = scmp.eq.s32.totalorder %s27, 0
      %p47 = por %p45, %p46
      %p48 = scmp.ne.s32.totalorder %s37, %s40
      %p49 = scmp.eq.s32.totalorder %s32, 1
      %p50 = por %p48, %p49
      %p51 = scmp.ne.s32.totalorder %s40, %s41
      %p52 = scmp.eq.s32.totalorder %s32, 0
      %p53 = por %p51, %p52
      %p54 = scmp.ne.s32.totalorder %s40, %s41
      %p55 = scmp.eq.s32.totalorder %s33, 1
      %p56 = por %p54, %p55
      %p58 = scmp.ne.s32.totalorder %s41, %s57
      %p59 = scmp.eq.s32.totalorder %s33, 0
      %p60 = por %p58, %p59
      %s61 = ssub.s32 %s27, %s34
      %p62 = scmp.eq.s32.totalorder %s61, 0
      %s64 = sadd.s32 %s63, 1
      %s65 = scalar_select %p62, %s63, %s64
      %p68 = pneg %p62
      %p69 = scmp.eq.s32.totalorder %s27, 1
      %p70 = por %p68, %p69
      %p71 = scmp.ne.s32.totalorder %s63, %s66
      %p72 = scmp.eq.s32.totalorder %s27, 0
      %p73 = por %p71, %p72
      %p74 = scmp.ne.s32.totalorder %s63, %s66
      %p75 = scmp.eq.s32.totalorder %s32, 1
      %p76 = por %p74, %p75
      %p77 = scmp.ne.s32.totalorder %s66, %s67
      %p78 = scmp.eq.s32.totalorder %s32, 0
      %p79 = por %p77, %p78
      %p80 = scmp.ne.s32.totalorder %s66, %s67
      %p81 = scmp.eq.s32.totalorder %s33, 1
      %p82 = por %p80, %p81
      %p84 = scmp.ne.s32.totalorder %s67, %s83
      %p85 = scmp.eq.s32.totalorder %s33, 0
      %p86 = por %p84, %p85
      %s88 = sadd.s32 %s87, 1
      %p91 = scmp.eq.s32.totalorder %s27, 1
      %p92 = scmp.ne.s32.totalorder %s87, %s89
      %p93 = scmp.eq.s32.totalorder %s27, 0
      %p94 = por %p92, %p93
      %p95 = scmp.ne.s32.totalorder %s87, %s89
      %p96 = scmp.eq.s32.totalorder %s32, 1
      %p97 = por %p95, %p96
      %p98 = scmp.ne.s32.totalorder %s89, %s90
      %p99 = scmp.eq.s32.totalorder %s32, 0
      %p100 = por %p98, %p99
      %p101 = scmp.ne.s32.totalorder %s89, %s90
      %p102 = scmp.eq.s32.totalorder %s33, 1
      %p103 = por %p101, %p102
      %p105 = scmp.ne.s32.totalorder %s90, %s104
      %p106 = scmp.eq.s32.totalorder %s33, 0
      %p107 = por %p105, %p106
      %s109 = sadd.s32 %s108, 1
      %p112 = scmp.eq.s32.totalorder %s27, 1
      %p113 = scmp.ne.s32.totalorder %s108, %s110
      %p114 = scmp.eq.s32.totalorder %s27, 0
      %p115 = por %p113, %p114
      %p116 = scmp.ne.s32.totalorder %s108, %s110
      %p117 = scmp.eq.s32.totalorder %s32, 1
      %p118 = por %p116, %p117
      %p119 = scmp.ne.s32.totalorder %s110, %s111
      %p120 = scmp.eq.s32.totalorder %s32, 0
      %p121 = por %p119, %p120
      %p122 = scmp.ne.s32.totalorder %s110, %s111
      %p123 = scmp.eq.s32.totalorder %s33, 1
      %p124 = por %p122, %p123
      %p126 = scmp.ne.s32.totalorder %s111, %s125
      %p127 = scmp.eq.s32.totalorder %s33, 0
      %p128 = por %p126, %p127
      %s130 = sadd.s32 %s129, 1
      %p133 = scmp.eq.s32.totalorder %s27, 1
      %p134 = scmp.ne.s32.totalorder %s129, %s131
      %p135 = scmp.eq.s32.totalorder %s27, 0
      %p136 = por %p134, %p135
      %p137 = scmp.ne.s32.totalorder %s129, %s131
      %p138 = scmp.eq.s32.totalorder %s32, 1
      %p139 = por %p137, %p138
      %p140 = scmp.ne.s32.totalorder %s131, %s132
      %p141 = scmp.eq.s32.totalorder %s32, 0
      %p142 = por %p140, %p141
      %p143 = scmp.ne.s32.totalorder %s131, %s132
      %p144 = scmp.eq.s32.totalorder %s33, 1
      %p145 = por %p143, %p144
      %p147 = scmp.ne.s32.totalorder %s132, %s146
      %p148 = scmp.eq.s32.totalorder %s33, 0
      %p149 = por %p147, %p148
      %s151 = sadd.s32 %s150, 1
      %p154 = scmp.eq.s32.totalorder %s27, 1
      %p155 = scmp.ne.s32.totalorder %s150, %s152
      %p156 = scmp.eq.s32.totalorder %s27, 0
      %p157 = por %p155, %p156
      %p158 = scmp.ne.s32.totalorder %s150, %s152
      %p159 = scmp.eq.s32.totalorder %s32, 1
      %p160 = por %p158, %p159
      %p161 = scmp.ne.s32.totalorder %s152, %s153
      %p162 = scmp.eq.s32.totalorder %s32, 0
      %p163 = por %p161, %p162
      %p164 = scmp.ne.s32.totalorder %s152, %s153
      %p165 = scmp.eq.s32.totalorder %s33, 1
      %p166 = por %p164, %p165
      %p168 = scmp.ne.s32.totalorder %s153, %s167
      %p169 = scmp.eq.s32.totalorder %s33, 0
      %p170 = por %p168, %p169
      %s172 = sadd.s32 %s171, 1
      %p175 = scmp.eq.s32.totalorder %s27, 1
      %p176 = scmp.ne.s32.totalorder %s171, %s173
      %p177 = scmp.eq.s32.totalorder %s27, 0
      %p178 = por %p176, %p177
      %p179 = scmp.ne.s32.totalorder %s171, %s173
      %p180 = scmp.eq.s32.totalorder %s32, 1
      %p181 = por %p179, %p180
      %p182 = scmp.ne.s32.totalorder %s173, %s174
      %p183 = scmp.eq.s32.totalorder %s32, 0
      %p184 = por %p182, %p183
      %p185 = scmp.ne.s32.totalorder %s173, %s174
      %p186 = scmp.eq.s32.totalorder %s33, 1
      %p187 = por %p185, %p186
      %p189 = scmp.ne.s32.totalorder %s174, %s188
      %p190 = scmp.eq.s32.totalorder %s33, 0
      %p191 = por %p189, %p190
      %s193 = sadd.s32 %s192, 1
      %p196 = scmp.eq.s32.totalorder %s27, 1
      %p197 = scmp.ne.s32.totalorder %s192, %s194
      %p198 = scmp.eq.s32.totalorder %s27, 0
      %p199 = por %p197, %p198
      %p200 = scmp.ne.s32.totalorder %s192, %s194
      %p201 = scmp.eq.s32.totalorder %s32, 1
      %p202 = por %p200, %p201
      %p203 = scmp.ne.s32.totalorder %s194, %s195
      %p204 = scmp.eq.s32.totalorder %s32, 0
      %p205 = por %p203, %p204
      %p206 = scmp.ne.s32.totalorder %s194, %s195
      %p207 = scmp.eq.s32.totalorder %s33, 1
      %p208 = por %p206, %p207
      %p210 = scmp.ne.s32.totalorder %s195, %s209
      %p211 = scmp.eq.s32.totalorder %s33, 0
      %p212 = por %p210, %p211
      %s214 = sadd.s32 %s213, 1
      %p217 = scmp.eq.s32.totalorder %s27, 1
      %p218 = scmp.ne.s32.totalorder %s213, %s215
      %p219 = scmp.eq.s32.totalorder %s27, 0
      %p220 = por %p218, %p219
      %p221 = scmp.ne.s32.totalorder %s213, %s215
      %p222 = scmp.eq.s32.totalorder %s32, 1
      %p223 = por %p221, %p222
      %p224 = scmp.ne.s32.totalorder %s215, %s216
      %p225 = scmp.eq.s32.totalorder %s32, 0
      %p226 = por %p224, %p225
      %p227 = scmp.ne.s32.totalorder %s215, %s216
      %p228 = scmp.eq.s32.totalorder %s33, 1
      %p229 = por %p227, %p228
      %p231 = scmp.ne.s32.totalorder %s216, %s230
      %p232 = scmp.eq.s32.totalorder %s33, 0
      %p233 = por %p231, %p232
      %s235 = sadd.s32 %s234, 1
      %p238 = scmp.eq.s32.totalorder %s27, 1
      %p239 = scmp.ne.s32.totalorder %s234, %s236
      %p240 = scmp.eq.s32.totalorder %s27, 0
      %p241 = por %p239, %p240
      %p242 = scmp.ne.s32.totalorder %s234, %s236
      %p243 = scmp.eq.s32.totalorder %s32, 1
      %p244 = por %p242, %p243
      %p245 = scmp.ne.s32.totalorder %s236, %s237
      %p246 = scmp.eq.s32.totalorder %s32, 0
      %p247 = por %p245, %p246
      %p248 = scmp.ne.s32.totalorder %s236, %s237
      %p249 = scmp.eq.s32.totalorder %s33, 1
      %p250 = por %p248, %p249
      %p252 = scmp.ne.s32.totalorder %s237, %s251
      %p253 = scmp.eq.s32.totalorder %s33, 0
      %p254 = por %p252, %p253
      %s256 = sadd.s32 %s255, 1
      %p259 = scmp.eq.s32.totalorder %s27, 1
      %p260 = scmp.ne.s32.totalorder %s255, %s257
      %p261 = scmp.eq.s32.totalorder %s27, 0
      %p262 = por %p260, %p261
      %p263 = scmp.ne.s32.totalorder %s255, %s257
      %p264 = scmp.eq.s32.totalorder %s32, 1
      %p265 = por %p263, %p264
      %p266 = scmp.ne.s32.totalorder %s257, %s258
      %p267 = scmp.eq.s32.totalorder %s32, 0
      %p268 = por %p266, %p267
      %p269 = scmp.ne.s32.totalorder %s257, %s258
      %p270 = scmp.eq.s32.totalorder %s33, 1
      %p271 = por %p269, %p270
      %p273 = scmp.ne.s32.totalorder %s258, %s272
      %p274 = scmp.eq.s32.totalorder %s33, 0
      %p275 = por %p273, %p274
      %s277 = sadd.s32 %s276, 1
      %p280 = scmp.eq.s32.totalorder %s27, 1
      %p281 = scmp.ne.s32.totalorder %s276, %s278
      %p282 = scmp.eq.s32.totalorder %s27, 0
      %p283 = por %p281, %p282
      %p284 = scmp.ne.s32.totalorder %s276, %s278
      %p285 = scmp.eq.s32.totalorder %s32, 1
      %p286 = por %p284, %p285
      %p287 = scmp.ne.s32.totalorder %s278, %s279
      %p288 = scmp.eq.s32.totalorder %s32, 0
      %p289 = por %p287, %p288
      %p290 = scmp.ne.s32.totalorder %s278, %s279
      %p291 = scmp.eq.s32.totalorder %s33, 1
      %p292 = por %p290, %p291
      %p294 = scmp.ne.s32.totalorder %s279, %s293
      %p295 = scmp.eq.s32.totalorder %s33, 0
      %p296 = por %p294, %p295
      %s298 = sadd.s32 %s297, 1
      %p301 = scmp.eq.s32.totalorder %s27, 1
      %p302 = scmp.ne.s32.totalorder %s297, %s299
      %p303 = scmp.eq.s32.totalorder %s27, 0
      %p304 = por %p302, %p303
      %p305 = scmp.ne.s32.totalorder %s297, %s299
      %p306 = scmp.eq.s32.totalorder %s32, 1
      %p307 = por %p305, %p306
      %p308 = scmp.ne.s32.totalorder %s299, %s300
      %p309 = scmp.eq.s32.totalorder %s32, 0
      %p310 = por %p308, %p309
      %p311 = scmp.ne.s32.totalorder %s299, %s300
      %p312 = scmp.eq.s32.totalorder %s33, 1
      %p313 = por %p311, %p312
      %p315 = scmp.ne.s32.totalorder %s300, %s314
      %p316 = scmp.eq.s32.totalorder %s33, 0
      %p317 = por %p315, %p316
      %s319 = sadd.s32 %s318, 1
      %p322 = scmp.eq.s32.totalorder %s27, 1
      %p323 = scmp.ne.s32.totalorder %s318, %s320
      %p324 = scmp.eq.s32.totalorder %s27, 0
      %p325 = por %p323, %p324
      %p326 = scmp.ne.s32.totalorder %s318, %s320
      %p327 = scmp.eq.s32.totalorder %s32, 1
      %p328 = por %p326, %p327
      %p329 = scmp.ne.s32.totalorder %s320, %s321
      %p330 = scmp.eq.s32.totalorder %s32, 0
      %p331 = por %p329, %p330
      %p332 = scmp.ne.s32.totalorder %s320, %s321
      %p333 = scmp.eq.s32.totalorder %s33, 1
      %p334 = por %p332, %p333
      %p336 = scmp.ne.s32.totalorder %s321, %s335
      %p337 = scmp.eq.s32.totalorder %s33, 0
      %p338 = por %p336, %p337
      %s339 = ssub.s32 %s27, %s34
      %p340 = scmp.eq.s32.totalorder %s339, 0
      %s342 = sadd.s32 %s341, 1
      %s343 = scalar_select %p340, %s341, %s342
      %p346 = pneg %p340
      %p347 = scmp.eq.s32.totalorder %s27, 1
      %p348 = por %p346, %p347
      %p349 = scmp.ne.s32.totalorder %s341, %s344
      %p350 = scmp.eq.s32.totalorder %s27, 0
      %p351 = por %p349, %p350
      %p352 = scmp.ne.s32.totalorder %s341, %s344
      %p353 = scmp.eq.s32.totalorder %s32, 1
      %p354 = por %p352, %p353
      %p355 = scmp.ne.s32.totalorder %s344, %s345
      %p356 = scmp.eq.s32.totalorder %s32, 0
      %p357 = por %p355, %p356
      %p358 = scmp.ne.s32.totalorder %s344, %s345
      %p359 = scmp.eq.s32.totalorder %s33, 1
      %p360 = por %p358, %p359
      %p362 = scmp.ne.s32.totalorder %s345, %s361
      %p363 = scmp.eq.s32.totalorder %s33, 0
      %p364 = por %p362, %p363
      %p365 = scmp.le.s32.totalorder 1, %s27
      %p366 = scmp.lt.s32.totalorder %s27, 3
      %p367 = pnand %p365, %p366
      %p368 = pneg %p367
      // Predicated region
      $region9: #{tpu_custom_call.1} parent=5 // pred_check
        _
      $region10: #{tpu_custom_call.1} parent=5 // pred_check_branch
        %370 = sbr.rel (%p367) target = $region12
      $region11: #{tpu_custom_call.1} parent=5 // pred_region
        %s371 = ssub.s32 %s27, 1
        // Predicated region
        $region13: #{tpu_custom_call.1} parent=11 // pred_check
          %p372 = pneg %p100
        $region14: #{tpu_custom_call.1} parent=11 // pred_check_branch
          %374 = sbr.rel (%p372) target = $region16
        $region15: #{tpu_custom_call.1} parent=11 // pred_region
          %s376 = ssub.s32 16, 16
          %377 = vsyncadd [#allocation3], %s376
          %s379 = sshll.u32 [#allocation2], 4
          %s380 = int_to_ptr.vmem [resolvable:$true] %s379
          %382 = dma.hbm_to_vmem [thread:$0]  %s2, 16, %s380, [#allocation3]
        $region16: #{tpu_custom_call.1} parent=11 // pred_fallthru
          _
        // Predicated region
        $region17: #{tpu_custom_call.1} parent=11 // pred_check
          %p383 = pneg %p121
        $region18: #{tpu_custom_call.1} parent=11 // pred_check_branch
          %385 = sbr.rel (%p383) target = $region20
        $region19: #{tpu_custom_call.1} parent=11 // pred_region
          %s387 = ssub.s32 16, 16
          %388 = vsyncadd [#allocation6], %s387
          %s390 = sshll.u32 [#allocation5], 4
          %s391 = int_to_ptr.vmem [resolvable:$true] %s390
          %393 = dma.hbm_to_vmem [thread:$0]  %s3, 16, %s391, [#allocation6]
        $region20: #{tpu_custom_call.1} parent=11 // pred_fallthru
          _
        // Predicated region
        $region21: #{tpu_custom_call.1} parent=11 // pred_check
          %p394 = pneg %p142
        $region22: #{tpu_custom_call.1} parent=11 // pred_check_branch
          %396 = sbr.rel (%p394) target = $region24
        $region23: #{tpu_custom_call.1} parent=11 // pred_region
          _
        $region24: #{tpu_custom_call.1} parent=11 // pred_fallthru
          _
        // Predicated region
        $region25: #{tpu_custom_call.1} parent=11 // pred_check
          %p397 = pneg %p163
        $region26: #{tpu_custom_call.1} parent=11 // pred_check_branch
          %399 = sbr.rel (%p397) target = $region28
        $region27: #{tpu_custom_call.1} parent=11 // pred_region
          %s401 = ssub.s32 16, 16
          %402 = vsyncadd [#allocation6], %s401
          %s404 = sshll.u32 [#allocation7], 4
          %s405 = int_to_ptr.vmem [resolvable:$true] %s404
          %407 = dma.hbm_to_vmem [thread:$0]  %s5, 16, %s405, [#allocation6]
        $region28: #{tpu_custom_call.1} parent=11 // pred_fallthru
          _
        // Predicated region
        $region29: #{tpu_custom_call.1} parent=11 // pred_check
          %p408 = pneg %p184
        $region30: #{tpu_custom_call.1} parent=11 // pred_check_branch
          %410 = sbr.rel (%p408) target = $region32
        $region31: #{tpu_custom_call.1} parent=11 // pred_region
          _
        $region32: #{tpu_custom_call.1} parent=11 // pred_fallthru
          _
        // Predicated region
        $region33: #{tpu_custom_call.1} parent=11 // pred_check
          %p411 = pneg %p205
        $region34: #{tpu_custom_call.1} parent=11 // pred_check_branch
          %413 = sbr.rel (%p411) target = $region36
        $region35: #{tpu_custom_call.1} parent=11 // pred_region
          %s415 = ssub.s32 16, 16
          %416 = vsyncadd [#allocation9], %s415
          %s418 = sshll.u32 [#allocation8], 4
          %s419 = int_to_ptr.vmem [resolvable:$true] %s418
          %421 = dma.hbm_to_vmem [thread:$0]  %s7, 16, %s419, [#allocation9]
        $region36: #{tpu_custom_call.1} parent=11 // pred_fallthru
          _
        // Predicated region
        $region37: #{tpu_custom_call.1} parent=11 // pred_check
          %p422 = pneg %p226
        $region38: #{tpu_custom_call.1} parent=11 // pred_check_branch
          %424 = sbr.rel (%p422) target = $region40
        $region39: #{tpu_custom_call.1} parent=11 // pred_region
          %s426 = ssub.s32 16, 16
          %427 = vsyncadd [#allocation9], %s426
          %s429 = sshll.u32 [#allocation10], 4
          %s430 = int_to_ptr.vmem [resolvable:$true] %s429
          %432 = dma.hbm_to_vmem [thread:$0]  %s8, 16, %s430, [#allocation9]
        $region40: #{tpu_custom_call.1} parent=11 // pred_fallthru
          _
        // Predicated region
        $region41: #{tpu_custom_call.1} parent=11 // pred_check
          %p433 = pneg %p247
        $region42: #{tpu_custom_call.1} parent=11 // pred_check_branch
          %435 = sbr.rel (%p433) target = $region44
        $region43: #{tpu_custom_call.1} parent=11 // pred_region
          %s437 = ssub.s32 16, 16
          %438 = vsyncadd [#allocation12], %s437
          %s440 = sshll.u32 [#allocation11], 4
          %s441 = int_to_ptr.vmem [resolvable:$true] %s440
          %443 = dma.hbm_to_vmem [thread:$0]  %s9, 16, %s441, [#allocation12]
        $region44: #{tpu_custom_call.1} parent=11 // pred_fallthru
          _
        // Predicated region
        $region45: #{tpu_custom_call.1} parent=11 // pred_check
          %p444 = pneg %p268
        $region46: #{tpu_custom_call.1} parent=11 // pred_check_branch
          %446 = sbr.rel (%p444) target = $region48
        $region47: #{tpu_custom_call.1} parent=11 // pred_region
          _
        $region48: #{tpu_custom_call.1} parent=11 // pred_fallthru
          _
        // Predicated region
        $region49: #{tpu_custom_call.1} parent=11 // pred_check
          %p447 = pneg %p289
        $region50: #{tpu_custom_call.1} parent=11 // pred_check_branch
          %449 = sbr.rel (%p447) target = $region52
        $region51: #{tpu_custom_call.1} parent=11 // pred_region
          _
        $region52: #{tpu_custom_call.1} parent=11 // pred_fallthru
          _
        // Predicated region
        $region53: #{tpu_custom_call.1} parent=11 // pred_check
          %p450 = pneg %p310
        $region54: #{tpu_custom_call.1} parent=11 // pred_check_branch
          %452 = sbr.rel (%p450) target = $region56
        $region55: #{tpu_custom_call.1} parent=11 // pred_region
          _
        $region56: #{tpu_custom_call.1} parent=11 // pred_fallthru
          _
        // Predicated region
        $region57: #{tpu_custom_call.1} parent=11 // pred_check
          %p453 = pneg %p331
        $region58: #{tpu_custom_call.1} parent=11 // pred_check_branch
          %455 = sbr.rel (%p453) target = $region60
        $region59: #{tpu_custom_call.1} parent=11 // pred_region
          _
        $region60: #{tpu_custom_call.1} parent=11 // pred_fallthru
          _
      $region12: #{tpu_custom_call.1} parent=5 // pred_fallthru
        _
      %p456 = scmp.lt.s32.totalorder %s27, 2
      // Predicated region
      $region61: #{tpu_custom_call.1} parent=5 // pred_check
        %p457 = pneg %p456
      $region62: #{tpu_custom_call.1} parent=5 // pred_check_branch
        %459 = sbr.rel (%p457) target = $region64
      $region63: #{tpu_custom_call.1} parent=5 // pred_region
        // Predicated region
        $region65: #{tpu_custom_call.1} parent=63 // pred_check
          %p460 = pneg %p47
        $region66: #{tpu_custom_call.1} parent=63 // pred_check_branch
          %462 = sbr.rel (%p460) target = $region68
        $region67: #{tpu_custom_call.1} parent=63 // pred_region
          %p463 = scmp.lt.s32.totalorder %s27, 1
          %s464 = scalar_select %p463, %s27, 1
          %s465 = smul.addr %s464, 8
          %s466 = scalar_lea.vmem %s0, %s465
        $region68: #{tpu_custom_call.1} parent=63 // pred_fallthru
          _
        // Predicated region
        $region69: #{tpu_custom_call.1} parent=63 // pred_check
          %p467 = pneg %p73
        $region70: #{tpu_custom_call.1} parent=63 // pred_check_branch
          %469 = sbr.rel (%p467) target = $region72
        $region71: #{tpu_custom_call.1} parent=63 // pred_region
          %p470 = scmp.lt.s32.totalorder %s27, 1
          %s471 = scalar_select %p470, %s27, 1
          %s472 = scalar_lea.vmem %s1, %s471
        $region72: #{tpu_custom_call.1} parent=63 // pred_fallthru
          _
      $region64: #{tpu_custom_call.1} parent=5 // pred_fallthru
        _
      %p473 = scmp.le.s32.totalorder 1, %s27
      %p474 = scmp.lt.s32.totalorder %s27, 3
      %p475 = pnand %p473, %p474
      %p476 = pneg %p475
      // Predicated region
      $region73: #{tpu_custom_call.1} parent=5 // pred_check
        _
      $region74: #{tpu_custom_call.1} parent=5 // pred_check_branch
        %478 = sbr.rel (%p475) target = $region76
      $region75: #{tpu_custom_call.1} parent=5 // pred_region
        %s479 = ssub.s32 %s27, 1
        // Predicated region
        $region77: #{tpu_custom_call.1} parent=75 // pred_check
          %p480 = pneg %p100
        $region78: #{tpu_custom_call.1} parent=75 // pred_check_branch
          %482 = sbr.rel (%p480) target = $region80
        $region79: #{tpu_custom_call.1} parent=75 // pred_region
          %483 = dma.done [#allocation3], 16
        $region80: #{tpu_custom_call.1} parent=75 // pred_fallthru
          _
        // Predicated region
        $region81: #{tpu_custom_call.1} parent=75 // pred_check
          %p484 = pneg %p121
        $region82: #{tpu_custom_call.1} parent=75 // pred_check_branch
          %486 = sbr.rel (%p484) target = $region84
        $region83: #{tpu_custom_call.1} parent=75 // pred_region
          %487 = dma.done [#allocation6], 16
        $region84: #{tpu_custom_call.1} parent=75 // pred_fallthru
          _
        // Predicated region
        $region85: #{tpu_custom_call.1} parent=75 // pred_check
          %p488 = pneg %p163
        $region86: #{tpu_custom_call.1} parent=75 // pred_check_branch
          %490 = sbr.rel (%p488) target = $region88
        $region87: #{tpu_custom_call.1} parent=75 // pred_region
          %491 = dma.done [#allocation6], 16
        $region88: #{tpu_custom_call.1} parent=75 // pred_fallthru
          _
        // Predicated region
        $region89: #{tpu_custom_call.1} parent=75 // pred_check
          %p492 = pneg %p205
        $region90: #{tpu_custom_call.1} parent=75 // pred_check_branch
          %494 = sbr.rel (%p492) target = $region92
        $region91: #{tpu_custom_call.1} parent=75 // pred_region
          %495 = dma.done [#allocation9], 16
        $region92: #{tpu_custom_call.1} parent=75 // pred_fallthru
          _
        // Predicated region
        $region93: #{tpu_custom_call.1} parent=75 // pred_check
          %p496 = pneg %p226
        $region94: #{tpu_custom_call.1} parent=75 // pred_check_branch
          %498 = sbr.rel (%p496) target = $region96
        $region95: #{tpu_custom_call.1} parent=75 // pred_region
          %499 = dma.done [#allocation9], 16
        $region96: #{tpu_custom_call.1} parent=75 // pred_fallthru
          _
        // Predicated region
        $region97: #{tpu_custom_call.1} parent=75 // pred_check
          %p500 = pneg %p247
        $region98: #{tpu_custom_call.1} parent=75 // pred_check_branch
          %502 = sbr.rel (%p500) target = $region100
        $region99: #{tpu_custom_call.1} parent=75 // pred_region
          %503 = dma.done [#allocation12], 16
        $region100: #{tpu_custom_call.1} parent=75 // pred_fallthru
          _
        %p504 = scmp.lt.s32.totalorder %s32, 1
        %s505 = scalar_select %p504, %s32, 1
        %s506 = smul.addr %s505, 8
        %s507 = scalar_lea.vmem %s0, %s506
        %p508 = pneg %p53
        %p509 = pneg %p50
        %p510 = scmp.lt.s32.totalorder %s32, 1
        %s511 = scalar_select %p510, %s32, 1
        %s512 = scalar_lea.vmem %s1, %s511
        %p513 = pneg %p79
        %p514 = pneg %p76
        %p515 = pneg %p100
        %p516 = pneg %p97
        %p517 = pneg %p121
        %p518 = pneg %p118
        %p519 = pneg %p142
        %p520 = pneg %p139
        %p521 = pneg %p163
        %p522 = pneg %p160
        %p523 = pneg %p184
        %p524 = pneg %p181
        %p525 = pneg %p205
        %p526 = pneg %p202
        %p527 = pneg %p226
        %p528 = pneg %p223
        %p529 = pneg %p247
        %p530 = pneg %p244
        %p531 = pneg %p268
        %p532 = pneg %p265
        %p533 = pneg %p289
        %p534 = pneg %p286
        %p535 = pneg %p310
        %p536 = pneg %p307
        %p537 = pneg %p331
        %p538 = pneg %p328
        %p539 = pneg %p357
        %p540 = pneg %p354
        %s541 = sand.u32 %s344, 1
        %s542 = scalar_lea.sflag [#allocation4], %s541
        %s543 = sand.u32 %s344, 1
        %s544 = smul.addr %s543, 8
        %s545 = scalar_lea.vmem [#allocation13], %s544
        %p546 = scmp.lt.s32.totalorder %s32, 1
        %s547 = scalar_select %p546, %s32, 1
        %s548 = smul.addr %s547, 8
        %s549 = scalar_lea.vmem %s0, %s548
        %p550 = scmp.lt.s32.totalorder %s32, 1
        %s551 = scalar_select %p550, %s32, 1
        %s552 = scalar_lea.vmem %s1, %s551
        %v554 = vld [vmem:[%s549] sm:$0xff]
        %v555 = vld [vmem:[%s552] sm:$0x1]
        %vm556 = vcmp.gt.f32.partialorder %v555, 0.0
        %v557 = vsel %vm556, 0.0, -1e+30
        %v558 = vld [vmem:[#allocation2] sm:$0x1]
        %v559 = vld [vmem:[#allocation5] sm:$0x1]
        %vm560 = vcmask 261120
        %v561 = vsel %vm560, %v554, 0.0
        %562 = vadd.xlane.f32.xlu0 %v561
        %v563 = vpop.xlane.xlu0 %562
        %v564 = vrcp.pop 32.0
        %v565 = vmul.f32 %v563, %v564
        %v566 = vsub.f32 %v554, %v565
        %v567 = vmul.f32 %v566, %v566
        %v568 = vsel %vm560, %v567, 0.0
        %569 = vadd.xlane.f32.xlu0 %v568
        %v570 = vpop.xlane.xlu0 %569
        %v571 = vmul.f32 %v570, %v564
        %v572 = vadd.f32 %v571, 1e-05
        %v573 = vrsqrt.pop %v572
        %v574 = vmul.f32 %v566, %v573
        %v576 = vlaneseq
        %v577 = vshrl.u32 %v576, 7
        %v578 = vsub.s32 0, %v577
        %v579 = vrot.slane %v558, %v578
        %v581 = vmul.f32 %v574, %v579
        %v583 = vlaneseq
        %v584 = vshrl.u32 %v583, 7
        %v585 = vsub.s32 0, %v584
        %v586 = vrot.slane %v559, %v585
        %v588 = vadd.f32 %v581, %v586
        %v589 = vpack.c.bf16 %v588, %v588
        %v590 = vld [vmem:[%s4] sm:$0xf]
        %v591 = vld [vmem:[%s4 + $0x4] sm:$0xf]
        %v592 = vld [vmem:[%s4 + $0x8] sm:$0xf]
        %v593 = vld [vmem:[%s4 + $0xc] sm:$0xf]
        %v594 = vld [vmem:[#allocation7] sm:$0x1]
        %v596 = vlaneseq
        %v597 = vshrl.u32 %v596, 7
        %v598 = vsub.s32 0, %v597
        %v599 = vrot.slane %v594, %v598
        %v605 = vunpack.c.l.b16 %v590
        %v606 = vunpack.c.l.b16 %v591
        %v607 = vunpack.c.l.b16 %v592
        %v608 = vunpack.c.l.b16 %v593
        %v609 = vpack.c.b16 %v606, %v605
        %v610 = vpack.c.b16 %v608, %v607
        %v614 = vsel %vm560, %v589, 0
        %616 = vmatprep.subr.bf16.mxu0 0
        %617 = vmatpush1.bf16.msra.mxu0 %v609
        %618 = vmatprep.subr.bf16.mxu0 0
        %619 = vmatpush1.bf16.msra.mxu0 %v610
        %620 = vmatprep.subr.bf16.mxu0 0
        %621 = vmatpush1.bf16.msra.mxu0 0
        %622 = vmatprep.subr.bf16.mxu0 0
        %623 = vmatpush1.bf16.msra.mxu0 0
        %624 = vmatprep.subr.bf16.mxu0 0
        %625 = vmatpush1.bf16.msra.mxu0 0
        %626 = vmatprep.subr.bf16.mxu0 0
        %627 = vmatpush1.bf16.msra.mxu0 0
        %628 = vmatprep.subr.bf16.mxu0 0
        %629 = vmatpush1.bf16.msra.mxu0 0
        %630 = vmatprep.subr.bf16.mxu0 0
        %631 = vmatpush1.bf16.msra.mxu0 0
        %632 = vmatprep.subr.bf16.mxu0 0
        %633 = vmatpush1.bf16.msra.mxu0 0
        %634 = vmatprep.subr.bf16.mxu0 0
        %635 = vmatpush1.bf16.msra.mxu0 0
        %636 = vmatprep.subr.bf16.mxu0 0
        %637 = vmatpush1.bf16.msra.mxu0 0
        %638 = vmatprep.subr.bf16.mxu0 0
        %639 = vmatpush1.bf16.msra.mxu0 0
        %640 = vmatprep.subr.bf16.mxu0 0
        %641 = vmatpush1.bf16.msra.mxu0 0
        %642 = vmatprep.subr.bf16.mxu0 0
        %643 = vmatpush1.bf16.msra.mxu0 0
        %644 = vmatprep.subr.bf16.mxu0 0
        %645 = vmatpush1.bf16.msra.mxu0 0
        %646 = vmatprep.subr.bf16.mxu0 0
        %647 = vmatpush1.bf16.msra.mxu0 0
        %648 = vmatprep.mubr.bf16.mxu0 0
        %649 = vmatmul.mubr.bf16.gmra.mrb[0].mxu0 %v614
        %v650 = vpop.f32.mrb[0].mxu0
        %v651 = vadd.f32 %v599, %v650
        %v652 = vpop.f32.mrb[0].mxu0
        %v653 = vpop.f32.mrb[0].mxu0
        %v654 = vpop.f32.mrb[0].mxu0
        %655 = vdwg.mxu0
        %v656 = vpack.c.bf16 %v651, %v651
        %658 = vrot.lane.b32.xlu0 %v656, 120
        %v659 = vpop.permute.xlu0 %658
        %660 = vrot.lane.b32.xlu0 %v656, 112
        %v661 = vpop.permute.xlu0 %660
        %662 = vrot.lane.b32.xlu0 %v656, 104
        %v663 = vpop.permute.xlu0 %662
        %664 = vrot.lane.b32.xlu0 %v656, 96
        %v665 = vpop.permute.xlu0 %664
        %vm666 = vcmask 64512
        %v668 = vsel %vm666, %v656, 0
        %v671 = vsel %vm666, %v665, 0
        %673 = vmatprep.subr.bf16.mxu0 0
        %674 = vmatpush1.bf16.xpose.msra.mxu0 %v671
        %675 = vmatprep.subr.bf16.mxu0 0
        %676 = vmatpush1.bf16.xpose.msra.mxu0 0
        %677 = vmatprep.subr.bf16.mxu0 0
        %678 = vmatpush1.bf16.xpose.msra.mxu0 0
        %679 = vmatprep.subr.bf16.mxu0 0
        %680 = vmatpush1.bf16.xpose.msra.mxu0 0
        %681 = vmatprep.subr.bf16.mxu0 0
        %682 = vmatpush1.bf16.xpose.msra.mxu0 0
        %683 = vmatprep.subr.bf16.mxu0 0
        %684 = vmatpush1.bf16.xpose.msra.mxu0 0
        %685 = vmatprep.subr.bf16.mxu0 0
        %686 = vmatpush1.bf16.xpose.msra.mxu0 0
        %687 = vmatprep.subr.bf16.mxu0 0
        %688 = vmatpush1.bf16.xpose.msra.mxu0 0
        %689 = vmatprep.subr.bf16.mxu0 0
        %690 = vmatpush1.bf16.xpose.msra.mxu0 0
        %691 = vmatprep.subr.bf16.mxu0 0
        %692 = vmatpush1.bf16.xpose.msra.mxu0 0
        %693 = vmatprep.subr.bf16.mxu0 0
        %694 = vmatpush1.bf16.xpose.msra.mxu0 0
        %695 = vmatprep.subr.bf16.mxu0 0
        %696 = vmatpush1.bf16.xpose.msra.mxu0 0
        %697 = vmatprep.subr.bf16.mxu0 0
        %698 = vmatpush1.bf16.xpose.msra.mxu0 0
        %699 = vmatprep.subr.bf16.mxu0 0
        %700 = vmatpush1.bf16.xpose.msra.mxu0 0
        %701 = vmatprep.subr.bf16.mxu0 0
        %702 = vmatpush1.bf16.xpose.msra.mxu0 0
        %703 = vmatprep.subr.bf16.mxu0 0
        %704 = vmatpush1.bf16.xpose.msra.mxu0 0
        %705 = vmatprep.mubr.bf16.mxu0 0
        %706 = vmatmul.mubr.bf16.gmra.mrb[0].mxu0 %v668
        %v707 = vpop.f32.mrb[0].mxu0
        %v708 = vadd.f32 0.0, %v707
        %v709 = vpop.f32.mrb[0].mxu0
        %v710 = vpop.f32.mrb[0].mxu0
        %v711 = vpop.f32.mrb[0].mxu0
        %712 = vdwg.mxu0
        %713 = vrot.lane.b32.xlu0 %v659, 96
        %v714 = vpop.permute.xlu0 %713
        %v716 = vsel %vm666, %v659, 0
        %v719 = vsel %vm666, %v714, 0
        %721 = vmatprep.subr.bf16.mxu0 0
        %722 = vmatpush1.bf16.xpose.msra.mxu0 %v719
        %723 = vmatprep.subr.bf16.mxu0 0
        %724 = vmatpush1.bf16.xpose.msra.mxu0 0
        %725 = vmatprep.subr.bf16.mxu0 0
        %726 = vmatpush1.bf16.xpose.msra.mxu0 0
        %727 = vmatprep.subr.bf16.mxu0 0
        %728 = vmatpush1.bf16.xpose.msra.mxu0 0
        %729 = vmatprep.subr.bf16.mxu0 0
        %730 = vmatpush1.bf16.xpose.msra.mxu0 0
        %731 = vmatprep.subr.bf16.mxu0 0
        %732 = vmatpush1.bf16.xpose.msra.mxu0 0
        %733 = vmatprep.subr.bf16.mxu0 0
        %734 = vmatpush1.bf16.xpose.msra.mxu0 0
        %735 = vmatprep.subr.bf16.mxu0 0
        %736 = vmatpush1.bf16.xpose.msra.mxu0 0
        %737 = vmatprep.subr.bf16.mxu0 0
        %738 = vmatpush1.bf16.xpose.msra.mxu0 0
        %739 = vmatprep.subr.bf16.mxu0 0
        %740 = vmatpush1.bf16.xpose.msra.mxu0 0
        %741 = vmatprep.subr.bf16.mxu0 0
        %742 = vmatpush1.bf16.xpose.msra.mxu0 0
        %743 = vmatprep.subr.bf16.mxu0 0
        %744 = vmatpush1.bf16.xpose.msra.mxu0 0
        %745 = vmatprep.subr.bf16.mxu0 0
        %746 = vmatpush1.bf16.xpose.msra.mxu0 0
        %747 = vmatprep.subr.bf16.mxu0 0
        %748 = vmatpush1.bf16.xpose.msra.mxu0 0
        %749 = vmatprep.subr.bf16.mxu0 0
        %750 = vmatpush1.bf16.xpose.msra.mxu0 0
        %751 = vmatprep.subr.bf16.mxu0 0
        %752 = vmatpush1.bf16.xpose.msra.mxu0 0
        %753 = vmatprep.mubr.bf16.mxu0 0
        %754 = vmatmul.mubr.bf16.gmra.mrb[0].mxu0 %v716
        %v755 = vpop.f32.mrb[0].mxu0
        %v756 = vadd.f32 0.0, %v755
        %v757 = vpop.f32.mrb[0].mxu0
        %v758 = vpop.f32.mrb[0].mxu0
        %v759 = vpop.f32.mrb[0].mxu0
        %760 = vdwg.mxu0
        %761 = vrot.lane.b32.xlu0 %v661, 96
        %v762 = vpop.permute.xlu0 %761
        %v764 = vsel %vm666, %v661, 0
        %v767 = vsel %vm666, %v762, 0
        %769 = vmatprep.subr.bf16.mxu0 0
        %770 = vmatpush1.bf16.xpose.msra.mxu0 %v767
        %771 = vmatprep.subr.bf16.mxu0 0
        %772 = vmatpush1.bf16.xpose.msra.mxu0 0
        %773 = vmatprep.subr.bf16.mxu0 0
        %774 = vmatpush1.bf16.xpose.msra.mxu0 0
        %775 = vmatprep.subr.bf16.mxu0 0
        %776 = vmatpush1.bf16.xpose.msra.mxu0 0
        %777 = vmatprep.subr.bf16.mxu0 0
        %778 = vmatpush1.bf16.xpose.msra.mxu0 0
        %779 = vmatprep.subr.bf16.mxu0 0
        %780 = vmatpush1.bf16.xpose.msra.mxu0 0
        %781 = vmatprep.subr.bf16.mxu0 0
        %782 = vmatpush1.bf16.xpose.msra.mxu0 0
        %783 = vmatprep.subr.bf16.mxu0 0
        %784 = vmatpush1.bf16.xpose.msra.mxu0 0
        %785 = vmatprep.subr.bf16.mxu0 0
        %786 = vmatpush1.bf16.xpose.msra.mxu0 0
        %787 = vmatprep.subr.bf16.mxu0 0
        %788 = vmatpush1.bf16.xpose.msra.mxu0 0
        %789 = vmatprep.subr.bf16.mxu0 0
        %790 = vmatpush1.bf16.xpose.msra.mxu0 0
        %791 = vmatprep.subr.bf16.mxu0 0
        %792 = vmatpush1.bf16.xpose.msra.mxu0 0
        %793 = vmatprep.subr.bf16.mxu0 0
        %794 = vmatpush1.bf16.xpose.msra.mxu0 0
        %795 = vmatprep.subr.bf16.mxu0 0
        %796 = vmatpush1.bf16.xpose.msra.mxu0 0
        %797 = vmatprep.subr.bf16.mxu0 0
        %798 = vmatpush1.bf16.xpose.msra.mxu0 0
        %799 = vmatprep.subr.bf16.mxu0 0
        %800 = vmatpush1.bf16.xpose.msra.mxu0 0
        %801 = vmatprep.mubr.bf16.mxu0 0
        %802 = vmatmul.mubr.bf16.gmra.mrb[0].mxu0 %v764
        %v803 = vpop.f32.mrb[0].mxu0
        %v804 = vadd.f32 0.0, %v803
        %v805 = vpop.f32.mrb[0].mxu0
        %v806 = vpop.f32.mrb[0].mxu0
        %v807 = vpop.f32.mrb[0].mxu0
        %808 = vdwg.mxu0
        %809 = vrot.lane.b32.xlu0 %v663, 96
        %v810 = vpop.permute.xlu0 %809
        %v812 = vsel %vm666, %v663, 0
        %v815 = vsel %vm666, %v810, 0
        %817 = vmatprep.subr.bf16.mxu0 0
        %818 = vmatpush1.bf16.xpose.msra.mxu0 %v815
        %819 = vmatprep.subr.bf16.mxu0 0
        %820 = vmatpush1.bf16.xpose.msra.mxu0 0
        %821 = vmatprep.subr.bf16.mxu0 0
        %822 = vmatpush1.bf16.xpose.msra.mxu0 0
        %823 = vmatprep.subr.bf16.mxu0 0
        %824 = vmatpush1.bf16.xpose.msra.mxu0 0
        %825 = vmatprep.subr.bf16.mxu0 0
        %826 = vmatpush1.bf16.xpose.msra.mxu0 0
        %827 = vmatprep.subr.bf16.mxu0 0
        %828 = vmatpush1.bf16.xpose.msra.mxu0 0
        %829 = vmatprep.subr.bf16.mxu0 0
        %830 = vmatpush1.bf16.xpose.msra.mxu0 0
        %831 = vmatprep.subr.bf16.mxu0 0
        %832 = vmatpush1.bf16.xpose.msra.mxu0 0
        %833 = vmatprep.subr.bf16.mxu0 0
        %834 = vmatpush1.bf16.xpose.msra.mxu0 0
        %835 = vmatprep.subr.bf16.mxu0 0
        %836 = vmatpush1.bf16.xpose.msra.mxu0 0
        %837 = vmatprep.subr.bf16.mxu0 0
        %838 = vmatpush1.bf16.xpose.msra.mxu0 0
        %839 = vmatprep.subr.bf16.mxu0 0
        %840 = vmatpush1.bf16.xpose.msra.mxu0 0
        %841 = vmatprep.subr.bf16.mxu0 0
        %842 = vmatpush1.bf16.xpose.msra.mxu0 0
        %843 = vmatprep.subr.bf16.mxu0 0
        %844 = vmatpush1.bf16.xpose.msra.mxu0 0
        %845 = vmatprep.subr.bf16.mxu0 0
        %846 = vmatpush1.bf16.xpose.msra.mxu0 0
        %847 = vmatprep.subr.bf16.mxu0 0
        %848 = vmatpush1.bf16.xpose.msra.mxu0 0
        %849 = vmatprep.mubr.bf16.mxu0 0
        %850 = vmatmul.mubr.bf16.gmra.mrb[0].mxu0 %v812
        %v851 = vpop.f32.mrb[0].mxu0
        %v852 = vadd.f32 0.0, %v851
        %v853 = vpop.f32.mrb[0].mxu0
        %v854 = vpop.f32.mrb[0].mxu0
        %v855 = vpop.f32.mrb[0].mxu0
        %856 = vdwg.mxu0
        %v858 = vlaneseq
        %v859 = vshrl.u32 %v858, 7
        %v860 = vsub.s32 0, %v859
        %v861 = vrot.slane %v557, %v860
        %v863 = vadd.f32 %v708, %v861
        %v864 = vadd.f32 %v756, %v861
        %v865 = vadd.f32 %v804, %v861
        %v866 = vadd.f32 %v852, %v861
        %v867 = vsel %vm666, %v863, -inf
        %868 = vmax.xlane.f32.xlu0 %v867
        %v869 = vpop.xlane.xlu0 %868
        %v870 = vsel %vm666, %v864, -inf
        %871 = vmax.xlane.f32.xlu0 %v870
        %v872 = vpop.xlane.xlu0 %871
        %v873 = vsel %vm666, %v865, -inf
        %874 = vmax.xlane.f32.xlu0 %v873
        %v875 = vpop.xlane.xlu0 %874
        %v876 = vsel %vm666, %v866, -inf
        %877 = vmax.xlane.f32.xlu0 %v876
        %v878 = vpop.xlane.xlu0 %877
        %v879 = vsub.f32 %v863, %v869
        %v880 = vsub.f32 %v864, %v872
        %v881 = vsub.f32 %v865, %v875
        %v882 = vsub.f32 %v866, %v878
        %v883 = vmul.f32 %v879, 1.442695
        %v884 = vpow.pop %v883
        %v885 = vmul.f32 %v880, 1.442695
        %v886 = vpow.pop %v885
        %v887 = vmul.f32 %v881, 1.442695
        %v888 = vpow.pop %v887
        %v889 = vmul.f32 %v882, 1.442695
        %v890 = vpow.pop %v889
        %v891 = vsel %vm666, %v884, 0.0
        %892 = vadd.xlane.f32.xlu0 %v891
        %v893 = vpop.xlane.xlu0 %892
        %v894 = vsel %vm666, %v886, 0.0
        %895 = vadd.xlane.f32.xlu0 %v894
        %v896 = vpop.xlane.xlu0 %895
        %v897 = vsel %vm666, %v888, 0.0
        %898 = vadd.xlane.f32.xlu0 %v897
        %v899 = vpop.xlane.xlu0 %898
        %v900 = vsel %vm666, %v890, 0.0
        %901 = vadd.xlane.f32.xlu0 %v900
        %v902 = vpop.xlane.xlu0 %901
        %v903 = vpack.c.bf16 %v884, %v884
        %v904 = vpack.c.bf16 %v886, %v886
        %v905 = vpack.c.bf16 %v888, %v888
        %v906 = vpack.c.bf16 %v890, %v890
        %907 = vrot.lane.b32.xlu0 %v656, 64
        %v908 = vpop.permute.xlu0 %907
        %v910 = vsel %vm666, %v903, 0
        %vm912 = vcmask 1043456
        %v914 = vsel %vm912, %v908, 0
        %916 = vmatprep.subr.bf16.mxu0 0
        %917 = vmatpush1.bf16.msra.mxu0 %v914
        %918 = vmatprep.subr.bf16.mxu0 0
        %919 = vmatpush1.bf16.msra.mxu0 0
        %920 = vmatprep.subr.bf16.mxu0 0
        %921 = vmatpush1.bf16.msra.mxu0 0
        %922 = vmatprep.subr.bf16.mxu0 0
        %923 = vmatpush1.bf16.msra.mxu0 0
        %924 = vmatprep.subr.bf16.mxu0 0
        %925 = vmatpush1.bf16.msra.mxu0 0
        %926 = vmatprep.subr.bf16.mxu0 0
        %927 = vmatpush1.bf16.msra.mxu0 0
        %928 = vmatprep.subr.bf16.mxu0 0
        %929 = vmatpush1.bf16.msra.mxu0 0
        %930 = vmatprep.subr.bf16.mxu0 0
        %931 = vmatpush1.bf16.msra.mxu0 0
        %932 = vmatprep.subr.bf16.mxu0 0
        %933 = vmatpush1.bf16.msra.mxu0 0
        %934 = vmatprep.subr.bf16.mxu0 0
        %935 = vmatpush1.bf16.msra.mxu0 0
        %936 = vmatprep.subr.bf16.mxu0 0
        %937 = vmatpush1.bf16.msra.mxu0 0
        %938 = vmatprep.subr.bf16.mxu0 0
        %939 = vmatpush1.bf16.msra.mxu0 0
        %940 = vmatprep.subr.bf16.mxu0 0
        %941 = vmatpush1.bf16.msra.mxu0 0
        %942 = vmatprep.subr.bf16.mxu0 0
        %943 = vmatpush1.bf16.msra.mxu0 0
        %944 = vmatprep.subr.bf16.mxu0 0
        %945 = vmatpush1.bf16.msra.mxu0 0
        %946 = vmatprep.subr.bf16.mxu0 0
        %947 = vmatpush1.bf16.msra.mxu0 0
        %948 = vmatprep.mubr.bf16.mxu0 0
        %949 = vmatmul.mubr.bf16.gmra.mrb[0].mxu0 %v910
        %v950 = vpop.f32.mrb[0].mxu0
        %v951 = vadd.f32 0.0, %v950
        %v952 = vpop.f32.mrb[0].mxu0
        %v953 = vpop.f32.mrb[0].mxu0
        %v954 = vpop.f32.mrb[0].mxu0
        %955 = vdwg.mxu0
        %956 = vrot.lane.b32.xlu0 %v659, 64
        %v957 = vpop.permute.xlu0 %956
        %v959 = vsel %vm666, %v904, 0
        %v962 = vsel %vm912, %v957, 0
        %964 = vmatprep.subr.bf16.mxu0 0
        %965 = vmatpush1.bf16.msra.mxu0 %v962
        %966 = vmatprep.subr.bf16.mxu0 0
        %967 = vmatpush1.bf16.msra.mxu0 0
        %968 = vmatprep.subr.bf16.mxu0 0
        %969 = vmatpush1.bf16.msra.mxu0 0
        %970 = vmatprep.subr.bf16.mxu0 0
        %971 = vmatpush1.bf16.msra.mxu0 0
        %972 = vmatprep.subr.bf16.mxu0 0
        %973 = vmatpush1.bf16.msra.mxu0 0
        %974 = vmatprep.subr.bf16.mxu0 0
        %975 = vmatpush1.bf16.msra.mxu0 0
        %976 = vmatprep.subr.bf16.mxu0 0
        %977 = vmatpush1.bf16.msra.mxu0 0
        %978 = vmatprep.subr.bf16.mxu0 0
        %979 = vmatpush1.bf16.msra.mxu0 0
        %980 = vmatprep.subr.bf16.mxu0 0
        %981 = vmatpush1.bf16.msra.mxu0 0
        %982 = vmatprep.subr.bf16.mxu0 0
        %983 = vmatpush1.bf16.msra.mxu0 0
        %984 = vmatprep.subr.bf16.mxu0 0
        %985 = vmatpush1.bf16.msra.mxu0 0
        %986 = vmatprep.subr.bf16.mxu0 0
        %987 = vmatpush1.bf16.msra.mxu0 0
        %988 = vmatprep.subr.bf16.mxu0 0
        %989 = vmatpush1.bf16.msra.mxu0 0
        %990 = vmatprep.subr.bf16.mxu0 0
        %991 = vmatpush1.bf16.msra.mxu0 0
        %992 = vmatprep.subr.bf16.mxu0 0
        %993 = vmatpush1.bf16.msra.mxu0 0
        %994 = vmatprep.subr.bf16.mxu0 0
        %995 = vmatpush1.bf16.msra.mxu0 0
        %996 = vmatprep.mubr.bf16.mxu0 0
        %997 = vmatmul.mubr.bf16.gmra.mrb[0].mxu0 %v959
        %v998 = vpop.f32.mrb[0].mxu0
        %v999 = vadd.f32 0.0, %v998
        %v1000 = vpop.f32.mrb[0].mxu0
        %v1001 = vpop.f32.mrb[0].mxu0
        %v1002 = vpop.f32.mrb[0].mxu0
        %1003 = vdwg.mxu0
        %1004 = vrot.lane.b32.xlu0 %v661, 64
        %v1005 = vpop.permute.xlu0 %1004
        %v1007 = vsel %vm666, %v905, 0
        %v1010 = vsel %vm912, %v1005, 0
        %1012 = vmatprep.subr.bf16.mxu0 0
        %1013 = vmatpush1.bf16.msra.mxu0 %v1010
        %1014 = vmatprep.subr.bf16.mxu0 0
        %1015 = vmatpush1.bf16.msra.mxu0 0
        %1016 = vmatprep.subr.bf16.mxu0 0
        %1017 = vmatpush1.bf16.msra.mxu0 0
        %1018 = vmatprep.subr.bf16.mxu0 0
        %1019 = vmatpush1.bf16.msra.mxu0 0
        %1020 = vmatprep.subr.bf16.mxu0 0
        %1021 = vmatpush1.bf16.msra.mxu0 0
        %1022 = vmatprep.subr.bf16.mxu0 0
        %1023 = vmatpush1.bf16.msra.mxu0 0
        %1024 = vmatprep.subr.bf16.mxu0 0
        %1025 = vmatpush1.bf16.msra.mxu0 0
        %1026 = vmatprep.subr.bf16.mxu0 0
        %1027 = vmatpush1.bf16.msra.mxu0 0
        %1028 = vmatprep.subr.bf16.mxu0 0
        %1029 = vmatpush1.bf16.msra.mxu0 0
        %1030 = vmatprep.subr.bf16.mxu0 0
        %1031 = vmatpush1.bf16.msra.mxu0 0
        %1032 = vmatprep.subr.bf16.mxu0 0
        %1033 = vmatpush1.bf16.msra.mxu0 0
        %1034 = vmatprep.subr.bf16.mxu0 0
        %1035 = vmatpush1.bf16.msra.mxu0 0
        %1036 = vmatprep.subr.bf16.mxu0 0
        %1037 = vmatpush1.bf16.msra.mxu0 0
        %1038 = vmatprep.subr.bf16.mxu0 0
        %1039 = vmatpush1.bf16.msra.mxu0 0
        %1040 = vmatprep.subr.bf16.mxu0 0
        %1041 = vmatpush1.bf16.msra.mxu0 0
        %1042 = vmatprep.subr.bf16.mxu0 0
        %1043 = vmatpush1.bf16.msra.mxu0 0
        %1044 = vmatprep.mubr.bf16.mxu0 0
        %1045 = vmatmul.mubr.bf16.gmra.mrb[0].mxu0 %v1007
        %v1046 = vpop.f32.mrb[0].mxu0
        %v1047 = vadd.f32 0.0, %v1046
        %v1048 = vpop.f32.mrb[0].mxu0
        %v1049 = vpop.f32.mrb[0].mxu0
        %v1050 = vpop.f32.mrb[0].mxu0
        %1051 = vdwg.mxu0
        %1052 = vrot.lane.b32.xlu0 %v663, 64
        %v1053 = vpop.permute.xlu0 %1052
        %v1055 = vsel %vm666, %v906, 0
        %v1058 = vsel %vm912, %v1053, 0
        %1060 = vmatprep.subr.bf16.mxu0 0
        %1061 = vmatpush1.bf16.msra.mxu0 %v1058
        %1062 = vmatprep.subr.bf16.mxu0 0
        %1063 = vmatpush1.bf16.msra.mxu0 0
        %1064 = vmatprep.subr.bf16.mxu0 0
        %1065 = vmatpush1.bf16.msra.mxu0 0
        %1066 = vmatprep.subr.bf16.mxu0 0
        %1067 = vmatpush1.bf16.msra.mxu0 0
        %1068 = vmatprep.subr.bf16.mxu0 0
        %1069 = vmatpush1.bf16.msra.mxu0 0
        %1070 = vmatprep.subr.bf16.mxu0 0
        %1071 = vmatpush1.bf16.msra.mxu0 0
        %1072 = vmatprep.subr.bf16.mxu0 0
        %1073 = vmatpush1.bf16.msra.mxu0 0
        %1074 = vmatprep.subr.bf16.mxu0 0
        %1075 = vmatpush1.bf16.msra.mxu0 0
        %1076 = vmatprep.subr.bf16.mxu0 0
        %1077 = vmatpush1.bf16.msra.mxu0 0
        %1078 = vmatprep.subr.bf16.mxu0 0
        %1079 = vmatpush1.bf16.msra.mxu0 0
        %1080 = vmatprep.subr.bf16.mxu0 0
        %1081 = vmatpush1.bf16.msra.mxu0 0
        %1082 = vmatprep.subr.bf16.mxu0 0
        %1083 = vmatpush1.bf16.msra.mxu0 0
        %1084 = vmatprep.subr.bf16.mxu0 0
        %1085 = vmatpush1.bf16.msra.mxu0 0
        %1086 = vmatprep.subr.bf16.mxu0 0
        %1087 = vmatpush1.bf16.msra.mxu0 0
        %1088 = vmatprep.subr.bf16.mxu0 0
        %1089 = vmatpush1.bf16.msra.mxu0 0
        %1090 = vmatprep.subr.bf16.mxu0 0
        %1091 = vmatpush1.bf16.msra.mxu0 0
        %1092 = vmatprep.mubr.bf16.mxu0 0
        %1093 = vmatmul.mubr.bf16.gmra.mrb[0].mxu0 %v1055
        %v1094 = vpop.f32.mrb[0].mxu0
        %v1095 = vadd.f32 0.0, %v1094
        %v1096 = vpop.f32.mrb[0].mxu0
        %v1097 = vpop.f32.mrb[0].mxu0
        %v1098 = vpop.f32.mrb[0].mxu0
        %1099 = vdwg.mxu0
        %v1100 = vrcp.pop %v893
        %v1101 = vrcp.pop %v896
        %v1102 = vrcp.pop %v899
        %v1103 = vrcp.pop %v902
        %v1104 = vmul.f32 %v951, %v1100
        %v1105 = vmul.f32 %v999, %v1101
        %v1106 = vmul.f32 %v1047, %v1102
        %v1107 = vmul.f32 %v1095, %v1103
        %v1108 = vpack.c.bf16 %v1104, %v1104
        %v1109 = vpack.c.bf16 %v1105, %v1105
        %v1110 = vpack.c.bf16 %v1106, %v1106
        %v1111 = vpack.c.bf16 %v1107, %v1107
        %1113 = vrot.lane.b32.xlu0 %v1109, 8
        %v1114 = vpop.permute.xlu0 %1113
        %1116 = vrot.lane.b32.xlu0 %v1110, 16
        %v1117 = vpop.permute.xlu0 %1116
        %1119 = vrot.lane.b32.xlu0 %v1111, 24
        %v1120 = vpop.permute.xlu0 %1119
        %v1123 = vsel %vm666, %v1108, %v1114
        %vm1124 = vcmask 130048
        %v1126 = vsel %vm1124, %v1123, %v1117
        %vm1127 = vcmask 195584
        %v1129 = vsel %vm1127, %v1126, %v1120
        %v1130 = vld [vmem:[%s6] sm:$0xf]
        %v1131 = vld [vmem:[%s6 + $0x4] sm:$0xf]
        %v1132 = vld [vmem:[%s6 + $0x8] sm:$0xf]
        %v1133 = vld [vmem:[%s6 + $0xc] sm:$0xf]
        %v1134 = vld [vmem:[#allocation8] sm:$0x1]
        %v1136 = vlaneseq
        %v1137 = vshrl.u32 %v1136, 7
        %v1138 = vsub.s32 0, %v1137
        %v1139 = vrot.slane %v1134, %v1138
        %v1145 = vunpack.c.l.b16 %v1130
        %v1146 = vunpack.c.l.b16 %v1131
        %v1147 = vunpack.c.l.b16 %v1132
        %v1148 = vunpack.c.l.b16 %v1133
        %v1149 = vpack.c.b16 %v1146, %v1145
        %v1150 = vpack.c.b16 %v1148, %v1147
        %v1153 = vsel %vm560, %v1129, 0
        %1155 = vmatprep.subr.bf16.mxu0 0
        %1156 = vmatpush1.bf16.msra.mxu0 %v1149
        %1157 = vmatprep.subr.bf16.mxu0 0
        %1158 = vmatpush1.bf16.msra.mxu0 %v1150
        %1159 = vmatprep.subr.bf16.mxu0 0
        %1160 = vmatpush1.bf16.msra.mxu0 0
        %1161 = vmatprep.subr.bf16.mxu0 0
        %1162 = vmatpush1.bf16.msra.mxu0 0
        %1163 = vmatprep.subr.bf16.mxu0 0
        %1164 = vmatpush1.bf16.msra.mxu0 0
        %1165 = vmatprep.subr.bf16.mxu0 0
        %1166 = vmatpush1.bf16.msra.mxu0 0
        %1167 = vmatprep.subr.bf16.mxu0 0
        %1168 = vmatpush1.bf16.msra.mxu0 0
        %1169 = vmatprep.subr.bf16.mxu0 0
        %1170 = vmatpush1.bf16.msra.mxu0 0
        %1171 = vmatprep.subr.bf16.mxu0 0
        %1172 = vmatpush1.bf16.msra.mxu0 0
        %1173 = vmatprep.subr.bf16.mxu0 0
        %1174 = vmatpush1.bf16.msra.mxu0 0
        %1175 = vmatprep.subr.bf16.mxu0 0
        %1176 = vmatpush1.bf16.msra.mxu0 0
        %1177 = vmatprep.subr.bf16.mxu0 0
        %1178 = vmatpush1.bf16.msra.mxu0 0
        %1179 = vmatprep.subr.bf16.mxu0 0
        %1180 = vmatpush1.bf16.msra.mxu0 0
        %1181 = vmatprep.subr.bf16.mxu0 0
        %1182 = vmatpush1.bf16.msra.mxu0 0
        %1183 = vmatprep.subr.bf16.mxu0 0
        %1184 = vmatpush1.bf16.msra.mxu0 0
        %1185 = vmatprep.subr.bf16.mxu0 0
        %1186 = vmatpush1.bf16.msra.mxu0 0
        %1187 = vmatprep.mubr.bf16.mxu0 0
        %1188 = vmatmul.mubr.bf16.gmra.mrb[0].mxu0 %v1153
        %v1189 = vpop.f32.mrb[0].mxu0
        %v1190 = vadd.f32 %v1139, %v1189
        %v1191 = vpop.f32.mrb[0].mxu0
        %v1192 = vpop.f32.mrb[0].mxu0
        %v1193 = vpop.f32.mrb[0].mxu0
        %1194 = vdwg.mxu0
        %v1195 = vadd.f32 %v554, %v1190
        %v1196 = vld [vmem:[#allocation10] sm:$0x1]
        %v1197 = vld [vmem:[#allocation11] sm:$0x1]
        %v1198 = vsel %vm560, %v1195, 0.0
        %1199 = vadd.xlane.f32.xlu0 %v1198
        %v1200 = vpop.xlane.xlu0 %1199
        %v1201 = vmul.f32 %v1200, %v564
        %v1202 = vsub.f32 %v1195, %v1201
        %v1203 = vmul.f32 %v1202, %v1202
        %v1204 = vsel %vm560, %v1203, 0.0
        %1205 = vadd.xlane.f32.xlu0 %v1204
        %v1206 = vpop.xlane.xlu0 %1205
        %v1207 = vmul.f32 %v1206, %v564
        %v1208 = vadd.f32 %v1207, 1e-05
        %v1209 = vrsqrt.pop %v1208
        %v1210 = vmul.f32 %v1202, %v1209
        %v1212 = vlaneseq
        %v1213 = vshrl.u32 %v1212, 7
        %v1214 = vsub.s32 0, %v1213
        %v1215 = vrot.slane %v1196, %v1214
        %v1217 = vmul.f32 %v1210, %v1215
        %v1219 = vlaneseq
        %v1220 = vshrl.u32 %v1219, 7
        %v1221 = vsub.s32 0, %v1220
        %v1222 = vrot.slane %v1197, %v1221
        %v1224 = vadd.f32 %v1217, %v1222
        %v1225 = vpack.c.bf16 %v1224, %v1224
        %v1226 = vld [vmem:[%s10] sm:$0xf]
        %v1227 = vld [vmem:[%s10 + $0x4] sm:$0xf]
        %v1228 = vld [vmem:[%s10 + $0x8] sm:$0xf]
        %v1229 = vld [vmem:[%s10 + $0xc] sm:$0xf]
        %v1230 = vld [vmem:[%s11] sm:$0x1]
        %v1232 = vlaneseq
        %v1233 = vshrl.u32 %v1232, 7
        %v1234 = vsub.s32 0, %v1233
        %v1235 = vrot.slane %v1230, %v1234
        %v1241 = vunpack.c.l.b16 %v1226
        %v1242 = vunpack.c.l.b16 %v1227
        %v1243 = vunpack.c.l.b16 %v1228
        %v1244 = vunpack.c.l.b16 %v1229
        %v1245 = vpack.c.b16 %v1242, %v1241
        %v1246 = vpack.c.b16 %v1244, %v1243
        %v1250 = vsel %vm560, %v1225, 0
        %1252 = vmatprep.subr.bf16.mxu0 0
        %1253 = vmatpush1.bf16.msra.mxu0 %v1245
        %1254 = vmatprep.subr.bf16.mxu0 0
        %1255 = vmatpush1.bf16.msra.mxu0 %v1246
        %1256 = vmatprep.subr.bf16.mxu0 0
        %1257 = vmatpush1.bf16.msra.mxu0 0
        %1258 = vmatprep.subr.bf16.mxu0 0
        %1259 = vmatpush1.bf16.msra.mxu0 0
        %1260 = vmatprep.subr.bf16.mxu0 0
        %1261 = vmatpush1.bf16.msra.mxu0 0
        %1262 = vmatprep.subr.bf16.mxu0 0
        %1263 = vmatpush1.bf16.msra.mxu0 0
        %1264 = vmatprep.subr.bf16.mxu0 0
        %1265 = vmatpush1.bf16.msra.mxu0 0
        %1266 = vmatprep.subr.bf16.mxu0 0
        %1267 = vmatpush1.bf16.msra.mxu0 0
        %1268 = vmatprep.subr.bf16.mxu0 0
        %1269 = vmatpush1.bf16.msra.mxu0 0
        %1270 = vmatprep.subr.bf16.mxu0 0
        %1271 = vmatpush1.bf16.msra.mxu0 0
        %1272 = vmatprep.subr.bf16.mxu0 0
        %1273 = vmatpush1.bf16.msra.mxu0 0
        %1274 = vmatprep.subr.bf16.mxu0 0
        %1275 = vmatpush1.bf16.msra.mxu0 0
        %1276 = vmatprep.subr.bf16.mxu0 0
        %1277 = vmatpush1.bf16.msra.mxu0 0
        %1278 = vmatprep.subr.bf16.mxu0 0
        %1279 = vmatpush1.bf16.msra.mxu0 0
        %1280 = vmatprep.subr.bf16.mxu0 0
        %1281 = vmatpush1.bf16.msra.mxu0 0
        %1282 = vmatprep.subr.bf16.mxu0 0
        %1283 = vmatpush1.bf16.msra.mxu0 0
        %1284 = vmatprep.mubr.bf16.mxu0 0
        %1285 = vmatmul.mubr.bf16.gmra.mrb[0].mxu0 %v1250
        %v1286 = vpop.f32.mrb[0].mxu0
        %v1287 = vadd.f32 %v1235, %v1286
        %v1288 = vpop.f32.mrb[0].mxu0
        %v1289 = vpop.f32.mrb[0].mxu0
        %v1290 = vpop.f32.mrb[0].mxu0
        %1291 = vdwg.mxu0
        %v1292 = vmax.f32 %v1287, 0.0
        %v1293 = vpack.c.bf16 %v1292, %v1292
        %v1294 = vld [vmem:[%s12] sm:$0xf]
        %v1295 = vld [vmem:[%s12 + $0x4] sm:$0xf]
        %v1296 = vld [vmem:[%s12 + $0x8] sm:$0xf]
        %v1297 = vld [vmem:[%s12 + $0xc] sm:$0xf]
        %v1298 = vld [vmem:[%s12 + $0x10] sm:$0xf]
        %v1299 = vld [vmem:[%s12 + $0x14] sm:$0xf]
        %v1300 = vld [vmem:[%s12 + $0x18] sm:$0xf]
        %v1301 = vld [vmem:[%s12 + $0x1c] sm:$0xf]
        %v1302 = vld [vmem:[%s13] sm:$0x1]
        %v1304 = vlaneseq
        %v1305 = vshrl.u32 %v1304, 7
        %v1306 = vsub.s32 0, %v1305
        %v1307 = vrot.slane %v1302, %v1306
        %v1317 = vunpack.c.l.b16 %v1294
        %v1318 = vunpack.c.l.b16 %v1295
        %v1319 = vunpack.c.l.b16 %v1296
        %v1320 = vunpack.c.l.b16 %v1297
        %v1321 = vunpack.c.l.b16 %v1298
        %v1322 = vunpack.c.l.b16 %v1299
        %v1323 = vunpack.c.l.b16 %v1300
        %v1324 = vunpack.c.l.b16 %v1301
        %v1325 = vpack.c.b16 %v1318, %v1317
        %v1326 = vpack.c.b16 %v1320, %v1319
        %v1327 = vpack.c.b16 %v1322, %v1321
        %v1328 = vpack.c.b16 %v1324, %v1323
        %vm1333 = vcmask 523264
        %v1335 = vsel %vm1333, %v1293, 0
        %1337 = vmatprep.subr.bf16.mxu0 0
        %1338 = vmatpush1.bf16.msra.mxu0 %v1325
        %1339 = vmatprep.subr.bf16.mxu0 0
        %1340 = vmatpush1.bf16.msra.mxu0 %v1326
        %1341 = vmatprep.subr.bf16.mxu0 0
        %1342 = vmatpush1.bf16.msra.mxu0 %v1327
        %1343 = vmatprep.subr.bf16.mxu0 0
        %1344 = vmatpush1.bf16.msra.mxu0 %v1328
        %1345 = vmatprep.subr.bf16.mxu0 0
        %1346 = vmatpush1.bf16.msra.mxu0 0
        %1347 = vmatprep.subr.bf16.mxu0 0
        %1348 = vmatpush1.bf16.msra.mxu0 0
        %1349 = vmatprep.subr.bf16.mxu0 0
        %1350 = vmatpush1.bf16.msra.mxu0 0
        %1351 = vmatprep.subr.bf16.mxu0 0
        %1352 = vmatpush1.bf16.msra.mxu0 0
        %1353 = vmatprep.subr.bf16.mxu0 0
        %1354 = vmatpush1.bf16.msra.mxu0 0
        %1355 = vmatprep.subr.bf16.mxu0 0
        %1356 = vmatpush1.bf16.msra.mxu0 0
        %1357 = vmatprep.subr.bf16.mxu0 0
        %1358 = vmatpush1.bf16.msra.mxu0 0
        %1359 = vmatprep.subr.bf16.mxu0 0
        %1360 = vmatpush1.bf16.msra.mxu0 0
        %1361 = vmatprep.subr.bf16.mxu0 0
        %1362 = vmatpush1.bf16.msra.mxu0 0
        %1363 = vmatprep.subr.bf16.mxu0 0
        %1364 = vmatpush1.bf16.msra.mxu0 0
        %1365 = vmatprep.subr.bf16.mxu0 0
        %1366 = vmatpush1.bf16.msra.mxu0 0
        %1367 = vmatprep.subr.bf16.mxu0 0
        %1368 = vmatpush1.bf16.msra.mxu0 0
        %1369 = vmatprep.mubr.bf16.mxu0 0
        %1370 = vmatmul.mubr.bf16.gmra.mrb[0].mxu0 %v1335
        %v1371 = vpop.f32.mrb[0].mxu0
        %v1372 = vadd.f32 %v1307, %v1371
        %v1373 = vpop.f32.mrb[0].mxu0
        %v1374 = vpop.f32.mrb[0].mxu0
        %v1375 = vpop.f32.mrb[0].mxu0
        %1376 = vdwg.mxu0
        %v1377 = vadd.f32 %v1195, %v1372
        %1378 = vst.msk [vmem:[%s545] sm:$0xff] %vm560, %v1377
        %s1379 = sand.u32 %s344, 1
        %s1380 = scalar_lea.sflag [#allocation4], %s1379
        %s1381 = sand.u32 %s344, 1
        %s1382 = smul.addr %s1381, 8
        %s1383 = scalar_lea.vmem [#allocation13], %s1382
        // Predicated region
        $region101: #{tpu_custom_call.1} parent=75 // pred_check
          %p1384 = pneg %p354
        $region102: #{tpu_custom_call.1} parent=75 // pred_check_branch
          %1386 = sbr.rel (%p1384) target = $region104
        $region103: #{tpu_custom_call.1} parent=75 // pred_region
          %s1388 = ssub.s32 128, 128
          %1389 = vsyncadd %s1380, %s1388
          %s1390 = smul.addr %s32, 128
          %s1391 = scalar_lea.hbm %s14, %s1390
          %s1393 = sshll.u32 %s1383, 4
          %s1394 = int_to_ptr.vmem [resolvable:$true] %s1393
          %1396 = dma.vmem_to_hbm [thread:$0]  %s1394, 128, %s1391, %s1380
        $region104: #{tpu_custom_call.1} parent=75 // pred_fallthru
          _
      $region76: #{tpu_custom_call.1} parent=5 // pred_fallthru
        _
      %p1397 = scmp.le.s32.totalorder 2, %s27
      // Predicated region
      $region105: #{tpu_custom_call.1} parent=5 // pred_check
        %p1398 = pneg %p1397
      $region106: #{tpu_custom_call.1} parent=5 // pred_check_branch
        %1400 = sbr.rel (%p1398) target = $region108
      $region107: #{tpu_custom_call.1} parent=5 // pred_region
        %s1401 = ssub.s32 %s27, 2
        // Predicated region
        $region109: #{tpu_custom_call.1} parent=107 // pred_check
          %p1402 = pneg %p360
        $region110: #{tpu_custom_call.1} parent=107 // pred_check_branch
          %1404 = sbr.rel (%p1402) target = $region112
        $region111: #{tpu_custom_call.1} parent=107 // pred_region
          %s1405 = sand.u32 %s345, 1
          %s1406 = scalar_lea.sflag [#allocation4], %s1405
          %s1407 = sand.u32 %s345, 1
          %s1408 = smul.addr %s1407, 8
          %s1409 = scalar_lea.vmem [#allocation13], %s1408
          %1410 = dma.done %s1406, 128
        $region112: #{tpu_custom_call.1} parent=107 // pred_fallthru
          _
      $region108: #{tpu_custom_call.1} parent=5 // pred_fallthru
        _
    $region6: #{tpu_custom_call.1} parent=1 // loop_footer
      %s31 = sadd.s32 1, %s27
    $region7: #{tpu_custom_call.1} parent=1 // loop_footer_branch
      %26 = sbr.rel target = $region3
    $region8: #{tpu_custom_call.1} parent=1 // loop_exit
      _
    %1411 = vsyncpa [#allocation3], 1
    %s1412 = scalar_lea.sflag [#allocation3], 1
    %1413 = vsyncpa %s1412, 1
    %1414 = vsyncpa [#allocation6], 1
    %1415 = vsyncpa [#allocation9], 1
    %1416 = vsyncpa [#allocation12], 1
    %1417 = vsyncpa [#allocation4], 1
    %s1418 = scalar_lea.sflag [#allocation4], 1
    %1419 = vsyncpa %s1418, 1

</llo_original>
